<compile_context>
chip_gen: v7x
topology: tpu7x:2x2x1
jax: 0.10.0
libtpu: 0.0.40
codegen_flags: <defaults>
</compile_context>

<pallas_src>
import math

import numpy as np

import jax
import jax.numpy as jnp
from jax.experimental import pallas as pl
from jax.experimental.pallas import tpu as pltpu


_IMG = 16                                         # input spatial size
_STAGES = ((16, 3, 8), (8, 8, 16), (4, 16, 32))   # (spatial, cin, cout) per conv block
_FEAT = (32, 2, 2)                                # final feature map (C, H, W)
_HASH_BIT = 16


# ----------------------------------------------------------------------------
# The single fused kernel: 3x (conv3x3 + bias + ReLU + maxpool2x2) + fc1 + ReLU
# + fc2 + ReLU + hash linear + tanh(scale * y).  Everything is matmuls / max.
# ----------------------------------------------------------------------------
def _vggfc_kernel(scale_ref, x_ref,
                  band1, rows1, csel1, rsel1, bias1,
                  band2, rows2, csel2, rsel2, bias2,
                  band3, rows3, csel3, rsel3, bias3,
                  fcsel, w1, b1, w2, b2, wh, bh,
                  o_ref):
    bf16, f32 = jnp.bfloat16, jnp.float32

    def mm(a, b):
        # every matmul rides the MXU in bf16, accumulates in f32
        return jnp.dot(a.astype(bf16), b.astype(bf16), preferred_element_type=f32)

    def conv_block(a, band, rows, csel, rsel, bias):
        # 3x3 conv (pad=1): vertical taps via 0/1 row-shift matmuls (image
        # h-borders are zero rows), horizontal taps + W-boundary padding are
        # folded into the banded weight matrices built host-side.
        t_top = mm(rows[0], a)                       # input row h-1  (kh = 0)
        t_bot = mm(rows[1], a)                       # input row h+1  (kh = 2)
        c = mm(t_top, band[0]) + mm(a, band[1]) + mm(t_bot, band[2])
        c = jnp.maximum(c + bias[...], 0.0)          # bias + ReLU, f32, 128 lanes
        # 2x2 max-pool: pair + compact columns (w) then rows (h) with 0/1
        # selection matmuls -> compacted, lane-dense result, no reshapes.
        c = jnp.maximum(mm(c, csel[0]), mm(c, csel[1]))
        return jnp.maximum(mm(rsel[0], c), mm(rsel[1], c))

    a = conv_block(x_ref[...], band1, rows1, csel1, rsel1, bias1)   # (N*8, 64)
    a = conv_block(a,          band2, rows2, csel2, rsel2, bias2)   # (N*4, 64)
    a = conv_block(a,          band3, rows3, csel3, rsel3, bias3)   # (N*2, 64)

    # Classifier head.  Dropout layers are identity in eval mode.
    # TODO(synk): training-mode Dropout (RNG mask) is not implemented.
    ev = mm(fcsel[0], a)                             # per-sample h=0 feature row
    od = mm(fcsel[1], a)                             # per-sample h=1 feature row
    h = jnp.maximum(mm(ev, w1[0]) + mm(od, w1[1]) + b1[...], 0.0)   # fc1 + ReLU
    h = jnp.maximum(mm(h, w2[...]) + b2[...], 0.0)                  # fc2 + ReLU
    y = mm(h, wh[...]) + bh[...]                                    # hash layer
    o_ref[...] = jnp.tanh(scale_ref[0] * y).astype(o_ref.dtype)     # tanh(scale*y)


# ----------------------------------------------------------------------------
# Parameter init (deterministic, synthetic, PyTorch layout).
# ----------------------------------------------------------------------------
def init_params(key, hash_bit=_HASH_BIT):
    ks = jax.random.split(key, 6)

    def conv_p(k, cin, cout):
        k1, k2 = jax.random.split(k)
        w = jax.random.normal(k1, (cout, cin, 3, 3), jnp.float32) / math.sqrt(cin * 9)
        b = jax.random.normal(k2, (cout,), jnp.float32) * 0.01
        return w, b

    def lin_p(k, fin, fout):
        k1, k2 = jax.random.split(k)
        w = jax.random.normal(k1, (fout, fin), jnp.float32) / math.sqrt(fin)
        b = jax.random.normal(k2, (fout,), jnp.float32) * 0.01
        return w, b

    C, H, W = _FEAT
    return {
        "conv1": conv_p(ks[0], 3, 8),
        "conv2": conv_p(ks[1], 8, 16),
        "conv3": conv_p(ks[2], 16, 32),
        "fc1": lin_p(ks[3], C * H * W, 64),     # classifier[0]
        "fc2": lin_p(ks[4], 64, 64),            # classifier[3]
        # hash_layer: weight ~ N(0, 0.01), bias = 0
        "hash": (jax.random.normal(ks[5], (hash_bit, 64), jnp.float32) * 0.01,
                 jnp.zeros((hash_bit,), jnp.float32)),
    }


# ----------------------------------------------------------------------------
# One-time host-side conversion of PyTorch-layout params into the constant
# matrices the fused kernel consumes.  All shifts / zero padding / pooling
# pairing / flatten permutation are baked into these matrices so the kernel
# needs no relayouts.
# ----------------------------------------------------------------------------
def prepare_params(params_pt, batch):
    N = batch
    ops = []

    for name, (S, cin, cout) in zip(("conv1", "conv2", "conv3"), _STAGES):
        w_pt, b_pt = params_pt[name]
        wc = np.asarray(w_pt, np.float32)             # (cout, cin, 3, 3)

        # (a) banded conv weights: one (W*cin, W*cout) matrix per vertical tap kh;
        #     encodes the dw shift and the W-boundary zero padding.
        #     input lane = w*cin + ci, output col = w*cout + co  (= 128 lanes).
        band = np.zeros((3, S * cin, S * cout), np.float32)
        for kh in range(3):
            for kw in range(3):
                blk = wc[:, :, kh, kw].T               # (cin, cout)
                for wo in range(S):
                    wi = wo + kw - 1
                    if 0 <= wi < S:
                        band[kh, wi * cin:(wi + 1) * cin,
                             wo * cout:(wo + 1) * cout] = blk

        # (b) vertical-tap row shifts (0/1), zero rows at per-image h borders.
        R = N * S
        rows = np.zeros((2, R, R), np.float32)
        for r in range(R):
            h = r % S
            if h > 0:
                rows[0, r, r - 1] = 1.0                # kh = 0 tap: input row h-1
            if h < S - 1:
                rows[1, r, r + 1] = 1.0                # kh = 2 tap: input row h+1

        # (c) 2x2 max-pool pairing + compaction as 0/1 selection matrices.
        csel = np.zeros((2, S * cout, (S // 2) * cout), np.float32)
        for wo in range(S // 2):
            for c in range(cout):
                csel[0, (2 * wo) * cout + c,     wo * cout + c] = 1.0
                csel[1, (2 * wo + 1) * cout + c, wo * cout + c] = 1.0
        Ro = N * (S // 2)
        rsel = np.zeros((2, Ro, R), np.float32)
        for n in range(N):
            for k in range(S // 2):
                rsel[0, n * (S // 2) + k, n * S + 2 * k] = 1.0
                rsel[1, n * (S // 2) + k, n * S + 2 * k + 1] = 1.0

        bias = np.tile(np.asarray(b_pt, np.float32), S)[None, :]   # (1, S*cout)

        ops += [jnp.asarray(band, jnp.bfloat16), jnp.asarray(rows, jnp.bfloat16),
                jnp.asarray(csel, jnp.bfloat16), jnp.asarray(rsel, jnp.bfloat16),
                jnp.asarray(bias, jnp.float32)]

    # classifier head --------------------------------------------------------
    Cf, Hf, Wf = _FEAT
    # (d) split the (N*Hf, Wf*Cf) feature rows into per-sample h=0 / h=1 rows.
    fcsel = np.zeros((2, N, N * Hf), np.float32)
    for n in range(N):
        fcsel[0, n, Hf * n] = 1.0
        fcsel[1, n, Hf * n + 1] = 1.0
    # (e) fc1 weight, split by feature-row h and permuted from PyTorch's NCHW
    #     flatten order to the kernel's (w, c) lane order.
    w1_pt, b1_pt = params_pt["fc1"]
    w1_pt = np.asarray(w1_pt, np.float32)              # (64, Cf*Hf*Wf)
    w1m = np.zeros((Hf, Wf * Cf, w1_pt.shape[0]), np.float32)
    for c in range(Cf):
        for wdx in range(Wf):
            lane = wdx * Cf + c
            for h in range(Hf):
                w1m[h, lane, :] = w1_pt[:, c * (Hf * Wf) + h * Wf + wdx]
    w2_pt, b2_pt = params_pt["fc2"]
    wh_pt, bh_pt = params_pt["hash"]

    ops += [jnp.asarray(fcsel, jnp.bfloat16),
            jnp.asarray(w1m, jnp.bfloat16),
            jnp.asarray(np.asarray(b1_pt, np.float32)[None, :], jnp.float32),
            jnp.asarray(np.asarray(w2_pt, np.float32).T, jnp.bfloat16),
            jnp.asarray(np.asarray(b2_pt, np.float32)[None, :], jnp.float32),
            jnp.asarray(np.asarray(wh_pt, np.float32).T, jnp.bfloat16),
            jnp.asarray(np.asarray(bh_pt, np.float32)[None, :], jnp.float32)]
    return ops


# ----------------------------------------------------------------------------
# Forward pass (eval mode: iter_num not incremented, Dropout = identity).
# ----------------------------------------------------------------------------
def vggfc_forward(kparams, x_nchw, iter_num=0, init_scale=1.0, gamma=0.005,
                  power=0.5, step_size=200):
    N = x_nchw.shape[0]
    hash_bit = kparams[-1].shape[-1]

    # single boundary layout change: NCHW -> (N*H, W*C); rows = (n, h), lanes = (w, c)
    x2d = jnp.transpose(x_nchw, (0, 2, 3, 1)).reshape(N * _IMG, _IMG * _STAGES[0][1])
    x2d = x2d.astype(jnp.bfloat16)

    # HashNet scale schedule: iter_num = 0 (eval) -> scale = init_scale.  The scale
    # reaches the kernel as a runtime SMEM scalar (no recompile when it changes).
    if iter_num % step_size == 0:
        scale = init_scale * math.pow(1.0 + gamma * iter_num, power)
    else:
        scale = init_scale
    scale_arr = jnp.full((1,), scale, jnp.float32)

    n_in = 2 + len(kparams)
    return pl.pallas_call(
        _vggfc_kernel,
        out_shape=jax.ShapeDtypeStruct((N, hash_bit), jnp.float32),
        in_specs=([pl.BlockSpec(memory_space=pltpu.MemorySpace.SMEM)] +
                  [pl.BlockSpec(memory_space=pltpu.MemorySpace.VMEM)] * (n_in - 1)),
        out_specs=pl.BlockSpec(memory_space=pltpu.MemorySpace.VMEM),
    )(scale_arr, x2d, *kparams)


# ----------------------------------------------------------------------------
# Pure-JAX/XLA reference (same semantics, f32) for a numerical self-check.
# ----------------------------------------------------------------------------
def reference_forward(params_pt, x_nchw, iter_num=0, init_scale=1.0,
                      gamma=0.005, power=0.5, step_size=200):
    hp = jax.lax.Precision.HIGHEST
    x = jnp.transpose(x_nchw, (0, 2, 3, 1)).astype(jnp.float32)
    for name in ("conv1", "conv2", "conv3"):
        w, b = params_pt[name]
        x = jax.lax.conv_general_dilated(
            x, jnp.transpose(w, (2, 3, 1, 0)), (1, 1), "SAME",
            dimension_numbers=("NHWC", "HWIO", "NHWC"), precision=hp) + b
        x = jnp.maximum(x, 0.0)
        x = jax.lax.reduce_window(x, -jnp.inf, jax.lax.max,
                                  (1, 2, 2, 1), (1, 2, 2, 1), "VALID")
    x = jnp.transpose(x, (0, 3, 1, 2)).reshape(x.shape[0], -1)   # PyTorch NCHW flatten
    w, b = params_pt["fc1"]
    x = jnp.maximum(jnp.dot(x, w.T, precision=hp) + b, 0.0)
    w, b = params_pt["fc2"]
    x = jnp.maximum(jnp.dot(x, w.T, precision=hp) + b, 0.0)
    w, b = params_pt["hash"]
    y = jnp.dot(x, w.T, precision=hp) + b
    if iter_num % step_size == 0:
        scale = init_scale * math.pow(1.0 + gamma * iter_num, power)
    else:
        scale = init_scale
    return jnp.tanh(scale * y)


if __name__ == "__main__":
    key = jax.random.PRNGKey(0)
    pkey, xkey = jax.random.split(key)

    N = 2
    params_pt = init_params(pkey, hash_bit=_HASH_BIT)   # PyTorch-layout params
    kparams = prepare_params(params_pt, batch=N)        # one-time kernel constants

    x = jax.random.normal(xkey, (N, 3, _IMG, _IMG), jnp.float32)   # NCHW input

    fwd = jax.jit(vggfc_forward)
    y = jax.block_until_ready(fwd(kparams, x))

    assert y.shape == (N, _HASH_BIT)
    assert bool(jnp.all(jnp.abs(y) <= 1.0))             # tanh range sanity

    # numerical cross-check vs the f32 reference (loose: kernel feeds the MXU bf16)
    y_ref = jax.block_until_ready(reference_forward(params_pt, x))
    max_err = float(jnp.max(jnp.abs(y - y_ref)))
    assert max_err < 5e-2, max_err

    print("KERNEL_OK")
</pallas_src>

<mosaic_0001>
module attributes {stable_mosaic.version = 11 : i64} {
  func.func @_vggfc_kernel(%arg0: memref<1xf32, #tpu.memory_space<smem>>, %arg1: memref<32x48xbf16, #tpu.memory_space<vmem>>, %arg2: memref<3x48x128xbf16, #tpu.memory_space<vmem>>, %arg3: memref<2x32x32xbf16, #tpu.memory_space<vmem>>, %arg4: memref<2x128x64xbf16, #tpu.memory_space<vmem>>, %arg5: memref<2x16x32xbf16, #tpu.memory_space<vmem>>, %arg6: memref<1x128xf32, #tpu.memory_space<vmem>>, %arg7: memref<3x64x128xbf16, #tpu.memory_space<vmem>>, %arg8: memref<2x16x16xbf16, #tpu.memory_space<vmem>>, %arg9: memref<2x128x64xbf16, #tpu.memory_space<vmem>>, %arg10: memref<2x8x16xbf16, #tpu.memory_space<vmem>>, %arg11: memref<1x128xf32, #tpu.memory_space<vmem>>, %arg12: memref<3x64x128xbf16, #tpu.memory_space<vmem>>, %arg13: memref<2x8x8xbf16, #tpu.memory_space<vmem>>, %arg14: memref<2x128x64xbf16, #tpu.memory_space<vmem>>, %arg15: memref<2x4x8xbf16, #tpu.memory_space<vmem>>, %arg16: memref<1x128xf32, #tpu.memory_space<vmem>>, %arg17: memref<2x2x4xbf16, #tpu.memory_space<vmem>>, %arg18: memref<2x64x64xbf16, #tpu.memory_space<vmem>>, %arg19: memref<1x64xf32, #tpu.memory_space<vmem>>, %arg20: memref<64x64xbf16, #tpu.memory_space<vmem>>, %arg21: memref<1x64xf32, #tpu.memory_space<vmem>>, %arg22: memref<64x16xbf16, #tpu.memory_space<vmem>>, %arg23: memref<1x16xf32, #tpu.memory_space<vmem>>, %arg24: memref<2x16xf32, #tpu.memory_space<vmem>>) attributes {dimension_semantics = [], scalar_prefetch = 0 : i64, scratch_operands = 0 : i64, tpu.core_type = #tpu.core_type<tc>} {
    %c0 = arith.constant 0 : index
    %c0_0 = arith.constant 0 : index
    %0 = vector.load %arg1[%c0, %c0_0] : memref<32x48xbf16, #tpu.memory_space<vmem>>, vector<32x48xbf16>
    %c0_1 = arith.constant 0 : index
    %c0_2 = arith.constant 0 : index
    %c0_3 = arith.constant 0 : index
    %1 = vector.load %arg3[%c0_1, %c0_2, %c0_3] : memref<2x32x32xbf16, #tpu.memory_space<vmem>>, vector<1x32x32xbf16>
    %2 = vector.shape_cast %1 : vector<1x32x32xbf16> to vector<32x32xbf16>
    %cst = arith.constant dense<0.000000e+00> : vector<32x48xf32>
    %3 = tpu.matmul %2, %0, %cst {dimension_numbers = #tpu.dot_dimension_numbers<[1], [0], [0], [1], [0, 0, 1, 1], [], []>} : vector<32x32xbf16>, vector<32x48xbf16>, vector<32x48xf32> -> vector<32x48xf32>
    %c1 = arith.constant 1 : index
    %c0_4 = arith.constant 0 : index
    %c0_5 = arith.constant 0 : index
    %4 = vector.load %arg3[%c1, %c0_4, %c0_5] : memref<2x32x32xbf16, #tpu.memory_space<vmem>>, vector<1x32x32xbf16>
    %5 = vector.shape_cast %4 : vector<1x32x32xbf16> to vector<32x32xbf16>
    %cst_6 = arith.constant dense<0.000000e+00> : vector<32x48xf32>
    %6 = tpu.matmul %5, %0, %cst_6 {dimension_numbers = #tpu.dot_dimension_numbers<[1], [0], [0], [1], [0, 0, 1, 1], [], []>} : vector<32x32xbf16>, vector<32x48xbf16>, vector<32x48xf32> -> vector<32x48xf32>
    %c0_7 = arith.constant 0 : index
    %c0_8 = arith.constant 0 : index
    %c0_9 = arith.constant 0 : index
    %7 = vector.load %arg2[%c0_7, %c0_8, %c0_9] : memref<3x48x128xbf16, #tpu.memory_space<vmem>>, vector<1x48x128xbf16>
    %8 = vector.shape_cast %7 : vector<1x48x128xbf16> to vector<48x128xbf16>
    %9 = arith.truncf %3 : vector<32x48xf32> to vector<32x48xbf16>
    %cst_10 = arith.constant dense<0.000000e+00> : vector<32x128xf32>
    %10 = tpu.matmul %9, %8, %cst_10 {dimension_numbers = #tpu.dot_dimension_numbers<[1], [0], [0], [1], [0, 0, 1, 1], [], []>} : vector<32x48xbf16>, vector<48x128xbf16>, vector<32x128xf32> -> vector<32x128xf32>
    %c1_11 = arith.constant 1 : index
    %c0_12 = arith.constant 0 : index
    %c0_13 = arith.constant 0 : index
    %11 = vector.load %arg2[%c1_11, %c0_12, %c0_13] : memref<3x48x128xbf16, #tpu.memory_space<vmem>>, vector<1x48x128xbf16>
    %12 = vector.shape_cast %11 : vector<1x48x128xbf16> to vector<48x128xbf16>
    %cst_14 = arith.constant dense<0.000000e+00> : vector<32x128xf32>
    %13 = tpu.matmul %0, %12, %cst_14 {dimension_numbers = #tpu.dot_dimension_numbers<[1], [0], [0], [1], [0, 0, 1, 1], [], []>} : vector<32x48xbf16>, vector<48x128xbf16>, vector<32x128xf32> -> vector<32x128xf32>
    %14 = arith.addf %10, %13 : vector<32x128xf32>
    %c2 = arith.constant 2 : index
    %c0_15 = arith.constant 0 : index
    %c0_16 = arith.constant 0 : index
    %15 = vector.load %arg2[%c2, %c0_15, %c0_16] : memref<3x48x128xbf16, #tpu.memory_space<vmem>>, vector<1x48x128xbf16>
    %16 = vector.shape_cast %15 : vector<1x48x128xbf16> to vector<48x128xbf16>
    %17 = arith.truncf %6 : vector<32x48xf32> to vector<32x48xbf16>
    %cst_17 = arith.constant dense<0.000000e+00> : vector<32x128xf32>
    %18 = tpu.matmul %17, %16, %cst_17 {dimension_numbers = #tpu.dot_dimension_numbers<[1], [0], [0], [1], [0, 0, 1, 1], [], []>} : vector<32x48xbf16>, vector<48x128xbf16>, vector<32x128xf32> -> vector<32x128xf32>
    %19 = arith.addf %14, %18 : vector<32x128xf32>
    %c0_18 = arith.constant 0 : index
    %c0_19 = arith.constant 0 : index
    %20 = vector.load %arg6[%c0_18, %c0_19] : memref<1x128xf32, #tpu.memory_space<vmem>>, vector<1x128xf32>
    %21 = vector.broadcast %20 : vector<1x128xf32> to vector<32x128xf32>
    %22 = arith.addf %19, %21 : vector<32x128xf32>
    %cst_20 = arith.constant 0.000000e+00 : f32
    %23 = vector.broadcast %cst_20 : f32 to vector<32x128xf32>
    %24 = arith.maximumf %22, %23 : vector<32x128xf32>
    %c0_21 = arith.constant 0 : index
    %c0_22 = arith.constant 0 : index
    %c0_23 = arith.constant 0 : index
    %25 = vector.load %arg4[%c0_21, %c0_22, %c0_23] : memref<2x128x64xbf16, #tpu.memory_space<vmem>>, vector<1x128x64xbf16>
    %26 = vector.shape_cast %25 : vector<1x128x64xbf16> to vector<128x64xbf16>
    %27 = arith.truncf %24 : vector<32x128xf32> to vector<32x128xbf16>
    %cst_24 = arith.constant dense<0.000000e+00> : vector<32x64xf32>
    %28 = tpu.matmul %27, %26, %cst_24 {dimension_numbers = #tpu.dot_dimension_numbers<[1], [0], [0], [1], [0, 0, 1, 1], [], []>} : vector<32x128xbf16>, vector<128x64xbf16>, vector<32x64xf32> -> vector<32x64xf32>
    %c1_25 = arith.constant 1 : index
    %c0_26 = arith.constant 0 : index
    %c0_27 = arith.constant 0 : index
    %29 = vector.load %arg4[%c1_25, %c0_26, %c0_27] : memref<2x128x64xbf16, #tpu.memory_space<vmem>>, vector<1x128x64xbf16>
    %30 = vector.shape_cast %29 : vector<1x128x64xbf16> to vector<128x64xbf16>
    %31 = arith.truncf %24 : vector<32x128xf32> to vector<32x128xbf16>
    %cst_28 = arith.constant dense<0.000000e+00> : vector<32x64xf32>
    %32 = tpu.matmul %31, %30, %cst_28 {dimension_numbers = #tpu.dot_dimension_numbers<[1], [0], [0], [1], [0, 0, 1, 1], [], []>} : vector<32x128xbf16>, vector<128x64xbf16>, vector<32x64xf32> -> vector<32x64xf32>
    %33 = arith.maximumf %28, %32 : vector<32x64xf32>
    %c0_29 = arith.constant 0 : index
    %c0_30 = arith.constant 0 : index
    %c0_31 = arith.constant 0 : index
    %34 = vector.load %arg5[%c0_29, %c0_30, %c0_31] : memref<2x16x32xbf16, #tpu.memory_space<vmem>>, vector<1x16x32xbf16>
    %35 = vector.shape_cast %34 : vector<1x16x32xbf16> to vector<16x32xbf16>
    %36 = arith.truncf %33 : vector<32x64xf32> to vector<32x64xbf16>
    %cst_32 = arith.constant dense<0.000000e+00> : vector<16x64xf32>
    %37 = tpu.matmul %35, %36, %cst_32 {dimension_numbers = #tpu.dot_dimension_numbers<[1], [0], [0], [1], [0, 0, 1, 1], [], []>} : vector<16x32xbf16>, vector<32x64xbf16>, vector<16x64xf32> -> vector<16x64xf32>
    %c1_33 = arith.constant 1 : index
    %c0_34 = arith.constant 0 : index
    %c0_35 = arith.constant 0 : index
    %38 = vector.load %arg5[%c1_33, %c0_34, %c0_35] : memref<2x16x32xbf16, #tpu.memory_space<vmem>>, vector<1x16x32xbf16>
    %39 = vector.shape_cast %38 : vector<1x16x32xbf16> to vector<16x32xbf16>
    %40 = arith.truncf %33 : vector<32x64xf32> to vector<32x64xbf16>
    %cst_36 = arith.constant dense<0.000000e+00> : vector<16x64xf32>
    %41 = tpu.matmul %39, %40, %cst_36 {dimension_numbers = #tpu.dot_dimension_numbers<[1], [0], [0], [1], [0, 0, 1, 1], [], []>} : vector<16x32xbf16>, vector<32x64xbf16>, vector<16x64xf32> -> vector<16x64xf32>
    %42 = arith.maximumf %37, %41 : vector<16x64xf32>
    %c0_37 = arith.constant 0 : index
    %c0_38 = arith.constant 0 : index
    %c0_39 = arith.constant 0 : index
    %43 = vector.load %arg8[%c0_37, %c0_38, %c0_39] : memref<2x16x16xbf16, #tpu.memory_space<vmem>>, vector<1x16x16xbf16>
    %44 = vector.shape_cast %43 : vector<1x16x16xbf16> to vector<16x16xbf16>
    %45 = arith.truncf %42 : vector<16x64xf32> to vector<16x64xbf16>
    %cst_40 = arith.constant dense<0.000000e+00> : vector<16x64xf32>
    %46 = tpu.matmul %44, %45, %cst_40 {dimension_numbers = #tpu.dot_dimension_numbers<[1], [0], [0], [1], [0, 0, 1, 1], [], []>} : vector<16x16xbf16>, vector<16x64xbf16>, vector<16x64xf32> -> vector<16x64xf32>
    %c1_41 = arith.constant 1 : index
    %c0_42 = arith.constant 0 : index
    %c0_43 = arith.constant 0 : index
    %47 = vector.load %arg8[%c1_41, %c0_42, %c0_43] : memref<2x16x16xbf16, #tpu.memory_space<vmem>>, vector<1x16x16xbf16>
    %48 = vector.shape_cast %47 : vector<1x16x16xbf16> to vector<16x16xbf16>
    %49 = arith.truncf %42 : vector<16x64xf32> to vector<16x64xbf16>
    %cst_44 = arith.constant dense<0.000000e+00> : vector<16x64xf32>
    %50 = tpu.matmul %48, %49, %cst_44 {dimension_numbers = #tpu.dot_dimension_numbers<[1], [0], [0], [1], [0, 0, 1, 1], [], []>} : vector<16x16xbf16>, vector<16x64xbf16>, vector<16x64xf32> -> vector<16x64xf32>
    %c0_45 = arith.constant 0 : index
    %c0_46 = arith.constant 0 : index
    %c0_47 = arith.constant 0 : index
    %51 = vector.load %arg7[%c0_45, %c0_46, %c0_47] : memref<3x64x128xbf16, #tpu.memory_space<vmem>>, vector<1x64x128xbf16>
    %52 = vector.shape_cast %51 : vector<1x64x128xbf16> to vector<64x128xbf16>
    %53 = arith.truncf %46 : vector<16x64xf32> to vector<16x64xbf16>
    %cst_48 = arith.constant dense<0.000000e+00> : vector<16x128xf32>
    %54 = tpu.matmul %53, %52, %cst_48 {dimension_numbers = #tpu.dot_dimension_numbers<[1], [0], [0], [1], [0, 0, 1, 1], [], []>} : vector<16x64xbf16>, vector<64x128xbf16>, vector<16x128xf32> -> vector<16x128xf32>
    %c1_49 = arith.constant 1 : index
    %c0_50 = arith.constant 0 : index
    %c0_51 = arith.constant 0 : index
    %55 = vector.load %arg7[%c1_49, %c0_50, %c0_51] : memref<3x64x128xbf16, #tpu.memory_space<vmem>>, vector<1x64x128xbf16>
    %56 = vector.shape_cast %55 : vector<1x64x128xbf16> to vector<64x128xbf16>
    %57 = arith.truncf %42 : vector<16x64xf32> to vector<16x64xbf16>
    %cst_52 = arith.constant dense<0.000000e+00> : vector<16x128xf32>
    %58 = tpu.matmul %57, %56, %cst_52 {dimension_numbers = #tpu.dot_dimension_numbers<[1], [0], [0], [1], [0, 0, 1, 1], [], []>} : vector<16x64xbf16>, vector<64x128xbf16>, vector<16x128xf32> -> vector<16x128xf32>
    %59 = arith.addf %54, %58 : vector<16x128xf32>
    %c2_53 = arith.constant 2 : index
    %c0_54 = arith.constant 0 : index
    %c0_55 = arith.constant 0 : index
    %60 = vector.load %arg7[%c2_53, %c0_54, %c0_55] : memref<3x64x128xbf16, #tpu.memory_space<vmem>>, vector<1x64x128xbf16>
    %61 = vector.shape_cast %60 : vector<1x64x128xbf16> to vector<64x128xbf16>
    %62 = arith.truncf %50 : vector<16x64xf32> to vector<16x64xbf16>
    %cst_56 = arith.constant dense<0.000000e+00> : vector<16x128xf32>
    %63 = tpu.matmul %62, %61, %cst_56 {dimension_numbers = #tpu.dot_dimension_numbers<[1], [0], [0], [1], [0, 0, 1, 1], [], []>} : vector<16x64xbf16>, vector<64x128xbf16>, vector<16x128xf32> -> vector<16x128xf32>
    %64 = arith.addf %59, %63 : vector<16x128xf32>
    %c0_57 = arith.constant 0 : index
    %c0_58 = arith.constant 0 : index
    %65 = vector.load %arg11[%c0_57, %c0_58] : memref<1x128xf32, #tpu.memory_space<vmem>>, vector<1x128xf32>
    %66 = vector.broadcast %65 : vector<1x128xf32> to vector<16x128xf32>
    %67 = arith.addf %64, %66 : vector<16x128xf32>
    %cst_59 = arith.constant 0.000000e+00 : f32
    %68 = vector.broadcast %cst_59 : f32 to vector<16x128xf32>
    %69 = arith.maximumf %67, %68 : vector<16x128xf32>
    %c0_60 = arith.constant 0 : index
    %c0_61 = arith.constant 0 : index
    %c0_62 = arith.constant 0 : index
    %70 = vector.load %arg9[%c0_60, %c0_61, %c0_62] : memref<2x128x64xbf16, #tpu.memory_space<vmem>>, vector<1x128x64xbf16>
    %71 = vector.shape_cast %70 : vector<1x128x64xbf16> to vector<128x64xbf16>
    %72 = arith.truncf %69 : vector<16x128xf32> to vector<16x128xbf16>
    %cst_63 = arith.constant dense<0.000000e+00> : vector<16x64xf32>
    %73 = tpu.matmul %72, %71, %cst_63 {dimension_numbers = #tpu.dot_dimension_numbers<[1], [0], [0], [1], [0, 0, 1, 1], [], []>} : vector<16x128xbf16>, vector<128x64xbf16>, vector<16x64xf32> -> vector<16x64xf32>
    %c1_64 = arith.constant 1 : index
    %c0_65 = arith.constant 0 : index
    %c0_66 = arith.constant 0 : index
    %74 = vector.load %arg9[%c1_64, %c0_65, %c0_66] : memref<2x128x64xbf16, #tpu.memory_space<vmem>>, vector<1x128x64xbf16>
    %75 = vector.shape_cast %74 : vector<1x128x64xbf16> to vector<128x64xbf16>
    %76 = arith.truncf %69 : vector<16x128xf32> to vector<16x128xbf16>
    %cst_67 = arith.constant dense<0.000000e+00> : vector<16x64xf32>
    %77 = tpu.matmul %76, %75, %cst_67 {dimension_numbers = #tpu.dot_dimension_numbers<[1], [0], [0], [1], [0, 0, 1, 1], [], []>} : vector<16x128xbf16>, vector<128x64xbf16>, vector<16x64xf32> -> vector<16x64xf32>
    %78 = arith.maximumf %73, %77 : vector<16x64xf32>
    %c0_68 = arith.constant 0 : index
    %c0_69 = arith.constant 0 : index
    %c0_70 = arith.constant 0 : index
    %79 = vector.load %arg10[%c0_68, %c0_69, %c0_70] : memref<2x8x16xbf16, #tpu.memory_space<vmem>>, vector<1x8x16xbf16>
    %80 = vector.shape_cast %79 : vector<1x8x16xbf16> to vector<8x16xbf16>
    %81 = arith.truncf %78 : vector<16x64xf32> to vector<16x64xbf16>
    %cst_71 = arith.constant dense<0.000000e+00> : vector<8x64xf32>
    %82 = tpu.matmul %80, %81, %cst_71 {dimension_numbers = #tpu.dot_dimension_numbers<[1], [0], [0], [1], [0, 0, 1, 1], [], []>} : vector<8x16xbf16>, vector<16x64xbf16>, vector<8x64xf32> -> vector<8x64xf32>
    %c1_72 = arith.constant 1 : index
    %c0_73 = arith.constant 0 : index
    %c0_74 = arith.constant 0 : index
    %83 = vector.load %arg10[%c1_72, %c0_73, %c0_74] : memref<2x8x16xbf16, #tpu.memory_space<vmem>>, vector<1x8x16xbf16>
    %84 = vector.shape_cast %83 : vector<1x8x16xbf16> to vector<8x16xbf16>
    %85 = arith.truncf %78 : vector<16x64xf32> to vector<16x64xbf16>
    %cst_75 = arith.constant dense<0.000000e+00> : vector<8x64xf32>
    %86 = tpu.matmul %84, %85, %cst_75 {dimension_numbers = #tpu.dot_dimension_numbers<[1], [0], [0], [1], [0, 0, 1, 1], [], []>} : vector<8x16xbf16>, vector<16x64xbf16>, vector<8x64xf32> -> vector<8x64xf32>
    %87 = arith.maximumf %82, %86 : vector<8x64xf32>
    %c0_76 = arith.constant 0 : index
    %c0_77 = arith.constant 0 : index
    %c0_78 = arith.constant 0 : index
    %88 = vector.load %arg13[%c0_76, %c0_77, %c0_78] : memref<2x8x8xbf16, #tpu.memory_space<vmem>>, vector<1x8x8xbf16>
    %89 = vector.shape_cast %88 : vector<1x8x8xbf16> to vector<8x8xbf16>
    %90 = arith.truncf %87 : vector<8x64xf32> to vector<8x64xbf16>
    %cst_79 = arith.constant dense<0.000000e+00> : vector<8x64xf32>
    %91 = tpu.matmul %89, %90, %cst_79 {dimension_numbers = #tpu.dot_dimension_numbers<[1], [0], [0], [1], [0, 0, 1, 1], [], []>} : vector<8x8xbf16>, vector<8x64xbf16>, vector<8x64xf32> -> vector<8x64xf32>
    %c1_80 = arith.constant 1 : index
    %c0_81 = arith.constant 0 : index
    %c0_82 = arith.constant 0 : index
    %92 = vector.load %arg13[%c1_80, %c0_81, %c0_82] : memref<2x8x8xbf16, #tpu.memory_space<vmem>>, vector<1x8x8xbf16>
    %93 = vector.shape_cast %92 : vector<1x8x8xbf16> to vector<8x8xbf16>
    %94 = arith.truncf %87 : vector<8x64xf32> to vector<8x64xbf16>
    %cst_83 = arith.constant dense<0.000000e+00> : vector<8x64xf32>
    %95 = tpu.matmul %93, %94, %cst_83 {dimension_numbers = #tpu.dot_dimension_numbers<[1], [0], [0], [1], [0, 0, 1, 1], [], []>} : vector<8x8xbf16>, vector<8x64xbf16>, vector<8x64xf32> -> vector<8x64xf32>
    %c0_84 = arith.constant 0 : index
    %c0_85 = arith.constant 0 : index
    %c0_86 = arith.constant 0 : index
    %96 = vector.load %arg12[%c0_84, %c0_85, %c0_86] : memref<3x64x128xbf16, #tpu.memory_space<vmem>>, vector<1x64x128xbf16>
    %97 = vector.shape_cast %96 : vector<1x64x128xbf16> to vector<64x128xbf16>
    %98 = arith.truncf %91 : vector<8x64xf32> to vector<8x64xbf16>
    %cst_87 = arith.constant dense<0.000000e+00> : vector<8x128xf32>
    %99 = tpu.matmul %98, %97, %cst_87 {dimension_numbers = #tpu.dot_dimension_numbers<[1], [0], [0], [1], [0, 0, 1, 1], [], []>} : vector<8x64xbf16>, vector<64x128xbf16>, vector<8x128xf32> -> vector<8x128xf32>
    %c1_88 = arith.constant 1 : index
    %c0_89 = arith.constant 0 : index
    %c0_90 = arith.constant 0 : index
    %100 = vector.load %arg12[%c1_88, %c0_89, %c0_90] : memref<3x64x128xbf16, #tpu.memory_space<vmem>>, vector<1x64x128xbf16>
    %101 = vector.shape_cast %100 : vector<1x64x128xbf16> to vector<64x128xbf16>
    %102 = arith.truncf %87 : vector<8x64xf32> to vector<8x64xbf16>
    %cst_91 = arith.constant dense<0.000000e+00> : vector<8x128xf32>
    %103 = tpu.matmul %102, %101, %cst_91 {dimension_numbers = #tpu.dot_dimension_numbers<[1], [0], [0], [1], [0, 0, 1, 1], [], []>} : vector<8x64xbf16>, vector<64x128xbf16>, vector<8x128xf32> -> vector<8x128xf32>
    %104 = arith.addf %99, %103 : vector<8x128xf32>
    %c2_92 = arith.constant 2 : index
    %c0_93 = arith.constant 0 : index
    %c0_94 = arith.constant 0 : index
    %105 = vector.load %arg12[%c2_92, %c0_93, %c0_94] : memref<3x64x128xbf16, #tpu.memory_space<vmem>>, vector<1x64x128xbf16>
    %106 = vector.shape_cast %105 : vector<1x64x128xbf16> to vector<64x128xbf16>
    %107 = arith.truncf %95 : vector<8x64xf32> to vector<8x64xbf16>
    %cst_95 = arith.constant dense<0.000000e+00> : vector<8x128xf32>
    %108 = tpu.matmul %107, %106, %cst_95 {dimension_numbers = #tpu.dot_dimension_numbers<[1], [0], [0], [1], [0, 0, 1, 1], [], []>} : vector<8x64xbf16>, vector<64x128xbf16>, vector<8x128xf32> -> vector<8x128xf32>
    %109 = arith.addf %104, %108 : vector<8x128xf32>
    %c0_96 = arith.constant 0 : index
    %c0_97 = arith.constant 0 : index
    %110 = vector.load %arg16[%c0_96, %c0_97] : memref<1x128xf32, #tpu.memory_space<vmem>>, vector<1x128xf32>
    %111 = vector.broadcast %110 : vector<1x128xf32> to vector<8x128xf32>
    %112 = arith.addf %109, %111 : vector<8x128xf32>
    %cst_98 = arith.constant 0.000000e+00 : f32
    %113 = vector.broadcast %cst_98 : f32 to vector<8x128xf32>
    %114 = arith.maximumf %112, %113 : vector<8x128xf32>
    %c0_99 = arith.constant 0 : index
    %c0_100 = arith.constant 0 : index
    %c0_101 = arith.constant 0 : index
    %115 = vector.load %arg14[%c0_99, %c0_100, %c0_101] : memref<2x128x64xbf16, #tpu.memory_space<vmem>>, vector<1x128x64xbf16>
    %116 = vector.shape_cast %115 : vector<1x128x64xbf16> to vector<128x64xbf16>
    %117 = arith.truncf %114 : vector<8x128xf32> to vector<8x128xbf16>
    %cst_102 = arith.constant dense<0.000000e+00> : vector<8x64xf32>
    %118 = tpu.matmul %117, %116, %cst_102 {dimension_numbers = #tpu.dot_dimension_numbers<[1], [0], [0], [1], [0, 0, 1, 1], [], []>} : vector<8x128xbf16>, vector<128x64xbf16>, vector<8x64xf32> -> vector<8x64xf32>
    %c1_103 = arith.constant 1 : index
    %c0_104 = arith.constant 0 : index
    %c0_105 = arith.constant 0 : index
    %119 = vector.load %arg14[%c1_103, %c0_104, %c0_105] : memref<2x128x64xbf16, #tpu.memory_space<vmem>>, vector<1x128x64xbf16>
    %120 = vector.shape_cast %119 : vector<1x128x64xbf16> to vector<128x64xbf16>
    %121 = arith.truncf %114 : vector<8x128xf32> to vector<8x128xbf16>
    %cst_106 = arith.constant dense<0.000000e+00> : vector<8x64xf32>
    %122 = tpu.matmul %121, %120, %cst_106 {dimension_numbers = #tpu.dot_dimension_numbers<[1], [0], [0], [1], [0, 0, 1, 1], [], []>} : vector<8x128xbf16>, vector<128x64xbf16>, vector<8x64xf32> -> vector<8x64xf32>
    %123 = arith.maximumf %118, %122 : vector<8x64xf32>
    %c0_107 = arith.constant 0 : index
    %c0_108 = arith.constant 0 : index
    %c0_109 = arith.constant 0 : index
    %124 = vector.load %arg15[%c0_107, %c0_108, %c0_109] : memref<2x4x8xbf16, #tpu.memory_space<vmem>>, vector<1x4x8xbf16>
    %125 = vector.shape_cast %124 : vector<1x4x8xbf16> to vector<4x8xbf16>
    %126 = arith.truncf %123 : vector<8x64xf32> to vector<8x64xbf16>
    %cst_110 = arith.constant dense<0.000000e+00> : vector<4x64xf32>
    %127 = tpu.matmul %125, %126, %cst_110 {dimension_numbers = #tpu.dot_dimension_numbers<[1], [0], [0], [1], [0, 0, 1, 1], [], []>} : vector<4x8xbf16>, vector<8x64xbf16>, vector<4x64xf32> -> vector<4x64xf32>
    %c1_111 = arith.constant 1 : index
    %c0_112 = arith.constant 0 : index
    %c0_113 = arith.constant 0 : index
    %128 = vector.load %arg15[%c1_111, %c0_112, %c0_113] : memref<2x4x8xbf16, #tpu.memory_space<vmem>>, vector<1x4x8xbf16>
    %129 = vector.shape_cast %128 : vector<1x4x8xbf16> to vector<4x8xbf16>
    %130 = arith.truncf %123 : vector<8x64xf32> to vector<8x64xbf16>
    %cst_114 = arith.constant dense<0.000000e+00> : vector<4x64xf32>
    %131 = tpu.matmul %129, %130, %cst_114 {dimension_numbers = #tpu.dot_dimension_numbers<[1], [0], [0], [1], [0, 0, 1, 1], [], []>} : vector<4x8xbf16>, vector<8x64xbf16>, vector<4x64xf32> -> vector<4x64xf32>
    %132 = arith.maximumf %127, %131 : vector<4x64xf32>
    %c0_115 = arith.constant 0 : index
    %c0_116 = arith.constant 0 : index
    %c0_117 = arith.constant 0 : index
    %133 = vector.load %arg17[%c0_115, %c0_116, %c0_117] : memref<2x2x4xbf16, #tpu.memory_space<vmem>>, vector<1x2x4xbf16>
    %134 = vector.shape_cast %133 : vector<1x2x4xbf16> to vector<2x4xbf16>
    %135 = arith.truncf %132 : vector<4x64xf32> to vector<4x64xbf16>
    %cst_118 = arith.constant dense<0.000000e+00> : vector<2x64xf32>
    %136 = tpu.matmul %134, %135, %cst_118 {dimension_numbers = #tpu.dot_dimension_numbers<[1], [0], [0], [1], [0, 0, 1, 1], [], []>} : vector<2x4xbf16>, vector<4x64xbf16>, vector<2x64xf32> -> vector<2x64xf32>
    %c1_119 = arith.constant 1 : index
    %c0_120 = arith.constant 0 : index
    %c0_121 = arith.constant 0 : index
    %137 = vector.load %arg17[%c1_119, %c0_120, %c0_121] : memref<2x2x4xbf16, #tpu.memory_space<vmem>>, vector<1x2x4xbf16>
    %138 = vector.shape_cast %137 : vector<1x2x4xbf16> to vector<2x4xbf16>
    %139 = arith.truncf %132 : vector<4x64xf32> to vector<4x64xbf16>
    %cst_122 = arith.constant dense<0.000000e+00> : vector<2x64xf32>
    %140 = tpu.matmul %138, %139, %cst_122 {dimension_numbers = #tpu.dot_dimension_numbers<[1], [0], [0], [1], [0, 0, 1, 1], [], []>} : vector<2x4xbf16>, vector<4x64xbf16>, vector<2x64xf32> -> vector<2x64xf32>
    %c0_123 = arith.constant 0 : index
    %c0_124 = arith.constant 0 : index
    %c0_125 = arith.constant 0 : index
    %141 = vector.load %arg18[%c0_123, %c0_124, %c0_125] : memref<2x64x64xbf16, #tpu.memory_space<vmem>>, vector<1x64x64xbf16>
    %142 = vector.shape_cast %141 : vector<1x64x64xbf16> to vector<64x64xbf16>
    %143 = arith.truncf %136 : vector<2x64xf32> to vector<2x64xbf16>
    %cst_126 = arith.constant dense<0.000000e+00> : vector<2x64xf32>
    %144 = tpu.matmul %143, %142, %cst_126 {dimension_numbers = #tpu.dot_dimension_numbers<[1], [0], [0], [1], [0, 0, 1, 1], [], []>} : vector<2x64xbf16>, vector<64x64xbf16>, vector<2x64xf32> -> vector<2x64xf32>
    %c1_127 = arith.constant 1 : index
    %c0_128 = arith.constant 0 : index
    %c0_129 = arith.constant 0 : index
    %145 = vector.load %arg18[%c1_127, %c0_128, %c0_129] : memref<2x64x64xbf16, #tpu.memory_space<vmem>>, vector<1x64x64xbf16>
    %146 = vector.shape_cast %145 : vector<1x64x64xbf16> to vector<64x64xbf16>
    %147 = arith.truncf %140 : vector<2x64xf32> to vector<2x64xbf16>
    %cst_130 = arith.constant dense<0.000000e+00> : vector<2x64xf32>
    %148 = tpu.matmul %147, %146, %cst_130 {dimension_numbers = #tpu.dot_dimension_numbers<[1], [0], [0], [1], [0, 0, 1, 1], [], []>} : vector<2x64xbf16>, vector<64x64xbf16>, vector<2x64xf32> -> vector<2x64xf32>
    %149 = arith.addf %144, %148 : vector<2x64xf32>
    %c0_131 = arith.constant 0 : index
    %c0_132 = arith.constant 0 : index
    %150 = vector.load %arg19[%c0_131, %c0_132] : memref<1x64xf32, #tpu.memory_space<vmem>>, vector<1x64xf32>
    %151 = vector.broadcast %150 : vector<1x64xf32> to vector<2x64xf32>
    %152 = arith.addf %149, %151 : vector<2x64xf32>
    %cst_133 = arith.constant 0.000000e+00 : f32
    %153 = vector.broadcast %cst_133 : f32 to vector<2x64xf32>
    %154 = arith.maximumf %152, %153 : vector<2x64xf32>
    %c0_134 = arith.constant 0 : index
    %c0_135 = arith.constant 0 : index
    %155 = vector.load %arg20[%c0_134, %c0_135] : memref<64x64xbf16, #tpu.memory_space<vmem>>, vector<64x64xbf16>
    %156 = arith.truncf %154 : vector<2x64xf32> to vector<2x64xbf16>
    %cst_136 = arith.constant dense<0.000000e+00> : vector<2x64xf32>
    %157 = tpu.matmul %156, %155, %cst_136 {dimension_numbers = #tpu.dot_dimension_numbers<[1], [0], [0], [1], [0, 0, 1, 1], [], []>} : vector<2x64xbf16>, vector<64x64xbf16>, vector<2x64xf32> -> vector<2x64xf32>
    %c0_137 = arith.constant 0 : index
    %c0_138 = arith.constant 0 : index
    %158 = vector.load %arg21[%c0_137, %c0_138] : memref<1x64xf32, #tpu.memory_space<vmem>>, vector<1x64xf32>
    %159 = vector.broadcast %158 : vector<1x64xf32> to vector<2x64xf32>
    %160 = arith.addf %157, %159 : vector<2x64xf32>
    %cst_139 = arith.constant 0.000000e+00 : f32
    %161 = vector.broadcast %cst_139 : f32 to vector<2x64xf32>
    %162 = arith.maximumf %160, %161 : vector<2x64xf32>
    %c0_140 = arith.constant 0 : index
    %c0_141 = arith.constant 0 : index
    %163 = vector.load %arg22[%c0_140, %c0_141] : memref<64x16xbf16, #tpu.memory_space<vmem>>, vector<64x16xbf16>
    %164 = arith.truncf %162 : vector<2x64xf32> to vector<2x64xbf16>
    %cst_142 = arith.constant dense<0.000000e+00> : vector<2x16xf32>
    %165 = tpu.matmul %164, %163, %cst_142 {dimension_numbers = #tpu.dot_dimension_numbers<[1], [0], [0], [1], [0, 0, 1, 1], [], []>} : vector<2x64xbf16>, vector<64x16xbf16>, vector<2x16xf32> -> vector<2x16xf32>
    %c0_143 = arith.constant 0 : index
    %c0_144 = arith.constant 0 : index
    %166 = vector.load %arg23[%c0_143, %c0_144] : memref<1x16xf32, #tpu.memory_space<vmem>>, vector<1x16xf32>
    %167 = vector.broadcast %166 : vector<1x16xf32> to vector<2x16xf32>
    %168 = arith.addf %165, %167 : vector<2x16xf32>
    %c0_145 = arith.constant 0 : index
    %169 = memref.load %arg0[%c0_145] : memref<1xf32, #tpu.memory_space<smem>>
    %170 = vector.broadcast %169 : f32 to vector<2x16xf32>
    %171 = arith.mulf %170, %168 : vector<2x16xf32>
    %172 = math.tanh %171 : vector<2x16xf32>
    %c0_146 = arith.constant 0 : index
    %c0_147 = arith.constant 0 : index
    %173 = vector.load %arg24[%c0_146, %c0_147] : memref<2x16xf32, #tpu.memory_space<vmem>>, vector<2x16xf32>
    tpu.vector_store %arg24[%c0_146, %c0_147], %172 {strides = array<i32>} : memref<2x16xf32, #tpu.memory_space<vmem>>, vector<2x16xf32>,
    return
  }
}

</mosaic_0001>

<llo_original>
// kernel: vggfc_forward.1
$region0: #{vggfc_forward.1}
  #allocation0 [shape = 'u32[]', space=smem, size = 0x4, offset = 0x4, fixed_abs, tag = 'smem constant byte address 0x4 - core index']
  #allocation1 [shape = 'u32[144,128]{1,0:T(1,128)}', space=vmem, size = 0x12000, scoped, tag = 'internal scratch']
  #allocation2 [shape = 'f32[1]{0:T(128)S(6)}', space=smem, size = 0x200, scoped, tag = 'scoped memory for vggfc_forward.1']
  %s0 = inlined_call_operand.<no memory space> [shape: f32[1], index: 0, kind: input, shape index: {}]
  %s1 = inlined_call_operand.vmem [shape: bf16[32,48], index: 1, kind: input, shape index: {}]
  %s2 = inlined_call_operand.vmem [shape: bf16[3,48,128], index: 2, kind: input, shape index: {}]
  %s3 = inlined_call_operand.vmem [shape: bf16[2,32,32], index: 3, kind: input, shape index: {}]
  %s4 = inlined_call_operand.vmem [shape: bf16[2,128,64], index: 4, kind: input, shape index: {}]
  %s5 = inlined_call_operand.vmem [shape: bf16[2,16,32], index: 5, kind: input, shape index: {}]
  %s6 = inlined_call_operand.vmem [shape: f32[1,128], index: 6, kind: input, shape index: {}]
  %s7 = inlined_call_operand.vmem [shape: bf16[3,64,128], index: 7, kind: input, shape index: {}]
  %s8 = inlined_call_operand.vmem [shape: bf16[2,16,16], index: 8, kind: input, shape index: {}]
  %s9 = inlined_call_operand.vmem [shape: bf16[2,128,64], index: 9, kind: input, shape index: {}]
  %s10 = inlined_call_operand.vmem [shape: bf16[2,8,16], index: 10, kind: input, shape index: {}]
  %s11 = inlined_call_operand.vmem [shape: f32[1,128], index: 11, kind: input, shape index: {}]
  %s12 = inlined_call_operand.vmem [shape: bf16[3,64,128], index: 12, kind: input, shape index: {}]
  %s13 = inlined_call_operand.vmem [shape: bf16[2,8,8], index: 13, kind: input, shape index: {}]
  %s14 = inlined_call_operand.vmem [shape: bf16[2,128,64], index: 14, kind: input, shape index: {}]
  %s15 = inlined_call_operand.vmem [shape: bf16[2,4,8], index: 15, kind: input, shape index: {}]
  %s16 = inlined_call_operand.vmem [shape: f32[1,128], index: 16, kind: input, shape index: {}]
  %s17 = inlined_call_operand.vmem [shape: bf16[2,2,4], index: 17, kind: input, shape index: {}]
  %s18 = inlined_call_operand.vmem [shape: bf16[2,64,64], index: 18, kind: input, shape index: {}]
  %s19 = inlined_call_operand.vmem [shape: f32[1,64], index: 19, kind: input, shape index: {}]
  %s20 = inlined_call_operand.vmem [shape: bf16[64,64], index: 20, kind: input, shape index: {}]
  %s21 = inlined_call_operand.vmem [shape: f32[1,64], index: 21, kind: input, shape index: {}]
  %s22 = inlined_call_operand.vmem [shape: bf16[64,16], index: 22, kind: input, shape index: {}]
  %s23 = inlined_call_operand.vmem [shape: f32[1,16], index: 23, kind: input, shape index: {}]
  %s24 = inlined_call_operand.hbm [shape: f32[2,16], index: 24, kind: output, shape index: {}]
  %s25 = sld [smem:[#allocation0]]
  $region106: #{vggfc_forward.1} parent=0
    _
  %s27 = ssub.s32 1, %s25
  %s28 = scalar_select 0, %s27, %s25
  %29 = sst [smem:[#allocation2]] %s0
  $region1: #{vggfc_forward.1} parent=0
    #allocation3 [shape = 'u8[1024]{0}', space=vmem, size = 0x400, scoped, tag = 'output window, operand 0, single buffered']
    #allocation4 [shape = 's32[1]{0}', space=sflag, size = 0x4, scoped, tag = 'scoped memory for vggfc_forward.1']
    %30 = vsyncpa [#allocation4], 0
    // Predicated region
    $region2: #{vggfc_forward.1} parent=1 // pred_check
      _
    $region3: #{vggfc_forward.1} parent=1 // pred_check_branch
      %32 = sbr.rel (0) target = $region5
    $region4: #{vggfc_forward.1} parent=1 // pred_region
      _
    $region5: #{vggfc_forward.1} parent=1 // pred_fallthru
      _
    // Predicated region
    $region6: #{vggfc_forward.1} parent=1 // pred_check
      _
    $region7: #{vggfc_forward.1} parent=1 // pred_check_branch
      %34 = sbr.rel (0) target = $region9
    $region8: #{vggfc_forward.1} parent=1 // pred_region
      _
    $region9: #{vggfc_forward.1} parent=1 // pred_fallthru
      _
    // Predicated region
    $region10: #{vggfc_forward.1} parent=1 // pred_check
      _
    $region11: #{vggfc_forward.1} parent=1 // pred_check_branch
      %36 = sbr.rel (0) target = $region13
    $region12: #{vggfc_forward.1} parent=1 // pred_region
      _
    $region13: #{vggfc_forward.1} parent=1 // pred_fallthru
      _
    // Predicated region
    $region14: #{vggfc_forward.1} parent=1 // pred_check
      _
    $region15: #{vggfc_forward.1} parent=1 // pred_check_branch
      %38 = sbr.rel (0) target = $region17
    $region16: #{vggfc_forward.1} parent=1 // pred_region
      _
    $region17: #{vggfc_forward.1} parent=1 // pred_fallthru
      _
    // Predicated region
    $region18: #{vggfc_forward.1} parent=1 // pred_check
      _
    $region19: #{vggfc_forward.1} parent=1 // pred_check_branch
      %40 = sbr.rel (0) target = $region21
    $region20: #{vggfc_forward.1} parent=1 // pred_region
      _
    $region21: #{vggfc_forward.1} parent=1 // pred_fallthru
      _
    // Predicated region
    $region22: #{vggfc_forward.1} parent=1 // pred_check
      _
    $region23: #{vggfc_forward.1} parent=1 // pred_check_branch
      %42 = sbr.rel (0) target = $region25
    $region24: #{vggfc_forward.1} parent=1 // pred_region
      _
    $region25: #{vggfc_forward.1} parent=1 // pred_fallthru
      _
    // Predicated region
    $region26: #{vggfc_forward.1} parent=1 // pred_check
      _
    $region27: #{vggfc_forward.1} parent=1 // pred_check_branch
      %44 = sbr.rel (0) target = $region29
    $region28: #{vggfc_forward.1} parent=1 // pred_region
      _
    $region29: #{vggfc_forward.1} parent=1 // pred_fallthru
      _
    // Predicated region
    $region30: #{vggfc_forward.1} parent=1 // pred_check
      _
    $region31: #{vggfc_forward.1} parent=1 // pred_check_branch
      %46 = sbr.rel (0) target = $region33
    $region32: #{vggfc_forward.1} parent=1 // pred_region
      _
    $region33: #{vggfc_forward.1} parent=1 // pred_fallthru
      _
    // Predicated region
    $region34: #{vggfc_forward.1} parent=1 // pred_check
      _
    $region35: #{vggfc_forward.1} parent=1 // pred_check_branch
      %48 = sbr.rel (0) target = $region37
    $region36: #{vggfc_forward.1} parent=1 // pred_region
      _
    $region37: #{vggfc_forward.1} parent=1 // pred_fallthru
      _
    // Predicated region
    $region38: #{vggfc_forward.1} parent=1 // pred_check
      _
    $region39: #{vggfc_forward.1} parent=1 // pred_check_branch
      %50 = sbr.rel (0) target = $region41
    $region40: #{vggfc_forward.1} parent=1 // pred_region
      _
    $region41: #{vggfc_forward.1} parent=1 // pred_fallthru
      _
    // Predicated region
    $region42: #{vggfc_forward.1} parent=1 // pred_check
      _
    $region43: #{vggfc_forward.1} parent=1 // pred_check_branch
      %52 = sbr.rel (0) target = $region45
    $region44: #{vggfc_forward.1} parent=1 // pred_region
      _
    $region45: #{vggfc_forward.1} parent=1 // pred_fallthru
      _
    // Predicated region
    $region46: #{vggfc_forward.1} parent=1 // pred_check
      _
    $region47: #{vggfc_forward.1} parent=1 // pred_check_branch
      %54 = sbr.rel (0) target = $region49
    $region48: #{vggfc_forward.1} parent=1 // pred_region
      _
    $region49: #{vggfc_forward.1} parent=1 // pred_fallthru
      _
    // Predicated region
    $region50: #{vggfc_forward.1} parent=1 // pred_check
      _
    $region51: #{vggfc_forward.1} parent=1 // pred_check_branch
      %56 = sbr.rel (0) target = $region53
    $region52: #{vggfc_forward.1} parent=1 // pred_region
      _
    $region53: #{vggfc_forward.1} parent=1 // pred_fallthru
      _
    // Predicated region
    $region54: #{vggfc_forward.1} parent=1 // pred_check
      _
    $region55: #{vggfc_forward.1} parent=1 // pred_check_branch
      %58 = sbr.rel (0) target = $region57
    $region56: #{vggfc_forward.1} parent=1 // pred_region
      _
    $region57: #{vggfc_forward.1} parent=1 // pred_fallthru
      _
    // Predicated region
    $region58: #{vggfc_forward.1} parent=1 // pred_check
      _
    $region59: #{vggfc_forward.1} parent=1 // pred_check_branch
      %60 = sbr.rel (0) target = $region61
    $region60: #{vggfc_forward.1} parent=1 // pred_region
      _
    $region61: #{vggfc_forward.1} parent=1 // pred_fallthru
      _
    // Predicated region
    $region62: #{vggfc_forward.1} parent=1 // pred_check
      _
    $region63: #{vggfc_forward.1} parent=1 // pred_check_branch
      %62 = sbr.rel (0) target = $region65
    $region64: #{vggfc_forward.1} parent=1 // pred_region
      _
    $region65: #{vggfc_forward.1} parent=1 // pred_fallthru
      _
    // Predicated region
    $region66: #{vggfc_forward.1} parent=1 // pred_check
      _
    $region67: #{vggfc_forward.1} parent=1 // pred_check_branch
      %64 = sbr.rel (0) target = $region69
    $region68: #{vggfc_forward.1} parent=1 // pred_region
      _
    $region69: #{vggfc_forward.1} parent=1 // pred_fallthru
      _
    // Predicated region
    $region70: #{vggfc_forward.1} parent=1 // pred_check
      _
    $region71: #{vggfc_forward.1} parent=1 // pred_check_branch
      %66 = sbr.rel (0) target = $region73
    $region72: #{vggfc_forward.1} parent=1 // pred_region
      _
    $region73: #{vggfc_forward.1} parent=1 // pred_fallthru
      _
    // Predicated region
    $region74: #{vggfc_forward.1} parent=1 // pred_check
      _
    $region75: #{vggfc_forward.1} parent=1 // pred_check_branch
      %68 = sbr.rel (0) target = $region77
    $region76: #{vggfc_forward.1} parent=1 // pred_region
      _
    $region77: #{vggfc_forward.1} parent=1 // pred_fallthru
      _
    // Predicated region
    $region78: #{vggfc_forward.1} parent=1 // pred_check
      _
    $region79: #{vggfc_forward.1} parent=1 // pred_check_branch
      %70 = sbr.rel (0) target = $region81
    $region80: #{vggfc_forward.1} parent=1 // pred_region
      _
    $region81: #{vggfc_forward.1} parent=1 // pred_fallthru
      _
    // Predicated region
    $region82: #{vggfc_forward.1} parent=1 // pred_check
      _
    $region83: #{vggfc_forward.1} parent=1 // pred_check_branch
      %72 = sbr.rel (0) target = $region85
    $region84: #{vggfc_forward.1} parent=1 // pred_region
      _
    $region85: #{vggfc_forward.1} parent=1 // pred_fallthru
      _
    // Predicated region
    $region86: #{vggfc_forward.1} parent=1 // pred_check
      _
    $region87: #{vggfc_forward.1} parent=1 // pred_check_branch
      %74 = sbr.rel (0) target = $region89
    $region88: #{vggfc_forward.1} parent=1 // pred_region
      _
    $region89: #{vggfc_forward.1} parent=1 // pred_fallthru
      _
    // Predicated region
    $region90: #{vggfc_forward.1} parent=1 // pred_check
      _
    $region91: #{vggfc_forward.1} parent=1 // pred_check_branch
      %76 = sbr.rel (0) target = $region93
    $region92: #{vggfc_forward.1} parent=1 // pred_region
      _
    $region93: #{vggfc_forward.1} parent=1 // pred_fallthru
      _
    // Predicated region
    $region94: #{vggfc_forward.1} parent=1 // pred_check
      _
    $region95: #{vggfc_forward.1} parent=1 // pred_check_branch
      %78 = sbr.rel (0) target = $region97
    $region96: #{vggfc_forward.1} parent=1 // pred_region
      _
    $region97: #{vggfc_forward.1} parent=1 // pred_fallthru
      _
    %v80 = vld [vmem:[%s1] sm:$0xf]
    %v81 = vld [vmem:[%s1 + $0x4] sm:$0xf]
    %v82 = vld [vmem:[%s1 + $0x8] sm:$0xf]
    %v83 = vld [vmem:[%s1 + $0xc] sm:$0xf]
    %v84 = vld [vmem:[%s3] sm:$0xf]
    %v85 = vld [vmem:[%s3 + $0x4] sm:$0xf]
    %v86 = vld [vmem:[%s3 + $0x8] sm:$0xf]
    %v87 = vld [vmem:[%s3 + $0xc] sm:$0xf]
    %v92 = vunpack.c.l.b16 %v84
    %v93 = vunpack.c.l.b16 %v85
    %v94 = vunpack.c.l.b16 %v86
    %v95 = vunpack.c.l.b16 %v87
    %v96 = vpack.c.b16 %v93, %v92
    %v97 = vpack.c.b16 %v95, %v94
    %v102 = vunpack.c.l.b16 %v80
    %v103 = vunpack.c.l.b16 %v81
    %v104 = vunpack.c.l.b16 %v82
    %v105 = vunpack.c.l.b16 %v83
    %v106 = vpack.c.b16 %v103, %v102
    %v107 = vpack.c.b16 %v105, %v104
    %vm110 = vcmask 261120
    %v112 = vsel %vm110, %v96, 0
    %v115 = vsel %vm110, %v97, 0
    %117 = vmatprep.subr.bf16.mxu0 0
    %118 = vmatpush1.bf16.msra.mxu0 %v106
    %119 = vmatprep.subr.bf16.mxu0 0
    %120 = vmatpush1.bf16.msra.mxu0 %v107
    %121 = vmatprep.subr.bf16.mxu0 0
    %122 = vmatpush1.bf16.msra.mxu0 0
    %123 = vmatprep.subr.bf16.mxu0 0
    %124 = vmatpush1.bf16.msra.mxu0 0
    %125 = vmatprep.subr.bf16.mxu0 0
    %126 = vmatpush1.bf16.msra.mxu0 0
    %127 = vmatprep.subr.bf16.mxu0 0
    %128 = vmatpush1.bf16.msra.mxu0 0
    %129 = vmatprep.subr.bf16.mxu0 0
    %130 = vmatpush1.bf16.msra.mxu0 0
    %131 = vmatprep.subr.bf16.mxu0 0
    %132 = vmatpush1.bf16.msra.mxu0 0
    %133 = vmatprep.subr.bf16.mxu0 0
    %134 = vmatpush1.bf16.msra.mxu0 0
    %135 = vmatprep.subr.bf16.mxu0 0
    %136 = vmatpush1.bf16.msra.mxu0 0
    %137 = vmatprep.subr.bf16.mxu0 0
    %138 = vmatpush1.bf16.msra.mxu0 0
    %139 = vmatprep.subr.bf16.mxu0 0
    %140 = vmatpush1.bf16.msra.mxu0 0
    %141 = vmatprep.subr.bf16.mxu0 0
    %142 = vmatpush1.bf16.msra.mxu0 0
    %143 = vmatprep.subr.bf16.mxu0 0
    %144 = vmatpush1.bf16.msra.mxu0 0
    %145 = vmatprep.subr.bf16.mxu0 0
    %146 = vmatpush1.bf16.msra.mxu0 0
    %147 = vmatprep.subr.bf16.mxu0 0
    %148 = vmatpush1.bf16.msra.mxu0 0
    %149 = vmatprep.mubr.bf16.mxu0 0
    %150 = vmatmul.mubr.bf16.gmra.mrb[0].mxu0 %v112
    %v151 = vpop.f32.mrb[0].mxu0
    %v152 = vadd.f32 0.0, %v151
    %v153 = vpop.f32.mrb[0].mxu0
    %v154 = vpop.f32.mrb[0].mxu0
    %v155 = vadd.f32 0.0, %v154
    %v156 = vpop.f32.mrb[0].mxu0
    %157 = vmatprep.mubr.bf16.mxu0 0
    %158 = vmatmul.mubr.bf16.gmra.mrb[0].mxu0 %v115
    %v159 = vpop.f32.mrb[0].mxu0
    %v160 = vadd.f32 0.0, %v159
    %v161 = vpop.f32.mrb[0].mxu0
    %v162 = vpop.f32.mrb[0].mxu0
    %v163 = vadd.f32 0.0, %v162
    %v164 = vpop.f32.mrb[0].mxu0
    %165 = vdwg.mxu0
    %s166 = scalar_lea.vmem %s3, 16
    %v167 = vld [vmem:[%s166] sm:$0xf]
    %v168 = vld [vmem:[%s166 + $0x4] sm:$0xf]
    %v169 = vld [vmem:[%s166 + $0x8] sm:$0xf]
    %v170 = vld [vmem:[%s166 + $0xc] sm:$0xf]
    %v175 = vunpack.c.l.b16 %v167
    %v176 = vunpack.c.l.b16 %v168
    %v177 = vunpack.c.l.b16 %v169
    %v178 = vunpack.c.l.b16 %v170
    %v179 = vpack.c.b16 %v176, %v175
    %v180 = vpack.c.b16 %v178, %v177
    %v182 = vsel %vm110, %v179, 0
    %v185 = vsel %vm110, %v180, 0
    %187 = vmatprep.subr.bf16.mxu0 0
    %188 = vmatpush1.bf16.msra.mxu0 %v106
    %189 = vmatprep.subr.bf16.mxu0 0
    %190 = vmatpush1.bf16.msra.mxu0 %v107
    %191 = vmatprep.subr.bf16.mxu0 0
    %192 = vmatpush1.bf16.msra.mxu0 0
    %193 = vmatprep.subr.bf16.mxu0 0
    %194 = vmatpush1.bf16.msra.mxu0 0
    %195 = vmatprep.subr.bf16.mxu0 0
    %196 = vmatpush1.bf16.msra.mxu0 0
    %197 = vmatprep.subr.bf16.mxu0 0
    %198 = vmatpush1.bf16.msra.mxu0 0
    %199 = vmatprep.subr.bf16.mxu0 0
    %200 = vmatpush1.bf16.msra.mxu0 0
    %201 = vmatprep.subr.bf16.mxu0 0
    %202 = vmatpush1.bf16.msra.mxu0 0
    %203 = vmatprep.subr.bf16.mxu0 0
    %204 = vmatpush1.bf16.msra.mxu0 0
    %205 = vmatprep.subr.bf16.mxu0 0
    %206 = vmatpush1.bf16.msra.mxu0 0
    %207 = vmatprep.subr.bf16.mxu0 0
    %208 = vmatpush1.bf16.msra.mxu0 0
    %209 = vmatprep.subr.bf16.mxu0 0
    %210 = vmatpush1.bf16.msra.mxu0 0
    %211 = vmatprep.subr.bf16.mxu0 0
    %212 = vmatpush1.bf16.msra.mxu0 0
    %213 = vmatprep.subr.bf16.mxu0 0
    %214 = vmatpush1.bf16.msra.mxu0 0
    %215 = vmatprep.subr.bf16.mxu0 0
    %216 = vmatpush1.bf16.msra.mxu0 0
    %217 = vmatprep.subr.bf16.mxu0 0
    %218 = vmatpush1.bf16.msra.mxu0 0
    %219 = vmatprep.mubr.bf16.mxu0 0
    %220 = vmatmul.mubr.bf16.gmra.mrb[0].mxu0 %v182
    %v221 = vpop.f32.mrb[0].mxu0
    %v222 = vadd.f32 0.0, %v221
    %v223 = vpop.f32.mrb[0].mxu0
    %v224 = vpop.f32.mrb[0].mxu0
    %v225 = vadd.f32 0.0, %v224
    %v226 = vpop.f32.mrb[0].mxu0
    %227 = vmatprep.mubr.bf16.mxu0 0
    %228 = vmatmul.mubr.bf16.gmra.mrb[0].mxu0 %v185
    %v229 = vpop.f32.mrb[0].mxu0
    %v230 = vadd.f32 0.0, %v229
    %v231 = vpop.f32.mrb[0].mxu0
    %v232 = vpop.f32.mrb[0].mxu0
    %v233 = vadd.f32 0.0, %v232
    %v234 = vpop.f32.mrb[0].mxu0
    %235 = vdwg.mxu0
    %v236 = vld [vmem:[%s2] sm:$0xf]
    %v237 = vld [vmem:[%s2 + $0x4] sm:$0xf]
    %v238 = vld [vmem:[%s2 + $0x8] sm:$0xf]
    %v239 = vld [vmem:[%s2 + $0xc] sm:$0xf]
    %v240 = vld [vmem:[%s2 + $0x10] sm:$0xf]
    %v241 = vld [vmem:[%s2 + $0x14] sm:$0xf]
    %v242 = vpack.c.bf16 %v155, %v152
    %v243 = vpack.c.bf16 %v163, %v160
    %s244 = scalar_lea.vmem %s2, 24
    %v245 = vld [vmem:[%s244] sm:$0xf]
    %v246 = vld [vmem:[%s244 + $0x4] sm:$0xf]
    %v247 = vld [vmem:[%s244 + $0x8] sm:$0xf]
    %v248 = vld [vmem:[%s244 + $0xc] sm:$0xf]
    %v249 = vld [vmem:[%s244 + $0x10] sm:$0xf]
    %v250 = vld [vmem:[%s244 + $0x14] sm:$0xf]
    %v257 = vunpack.c.l.b16 %v245
    %v258 = vunpack.c.l.b16 %v246
    %v259 = vunpack.c.l.b16 %v247
    %v260 = vunpack.c.l.b16 %v248
    %v261 = vunpack.c.l.b16 %v249
    %v262 = vunpack.c.l.b16 %v250
    %v263 = vpack.c.b16 %v258, %v257
    %v264 = vpack.c.b16 %v260, %v259
    %v265 = vpack.c.b16 %v262, %v261
    %vm269 = vcmask 392192
    %v271 = vsel %vm269, %v106, 0
    %v274 = vsel %vm269, %v107, 0
    %276 = vmatprep.subr.bf16.mxu0 0
    %277 = vmatpush1.bf16.msra.mxu0 %v263
    %278 = vmatprep.subr.bf16.mxu0 0
    %279 = vmatpush1.bf16.msra.mxu0 %v264
    %280 = vmatprep.subr.bf16.mxu0 0
    %281 = vmatpush1.bf16.msra.mxu0 %v265
    %282 = vmatprep.subr.bf16.mxu0 0
    %283 = vmatpush1.bf16.msra.mxu0 0
    %284 = vmatprep.subr.bf16.mxu0 0
    %285 = vmatpush1.bf16.msra.mxu0 0
    %286 = vmatprep.subr.bf16.mxu0 0
    %287 = vmatpush1.bf16.msra.mxu0 0
    %288 = vmatprep.subr.bf16.mxu0 0
    %289 = vmatpush1.bf16.msra.mxu0 0
    %290 = vmatprep.subr.bf16.mxu0 0
    %291 = vmatpush1.bf16.msra.mxu0 0
    %292 = vmatprep.subr.bf16.mxu0 0
    %293 = vmatpush1.bf16.msra.mxu0 0
    %294 = vmatprep.subr.bf16.mxu0 0
    %295 = vmatpush1.bf16.msra.mxu0 0
    %296 = vmatprep.subr.bf16.mxu0 0
    %297 = vmatpush1.bf16.msra.mxu0 0
    %298 = vmatprep.subr.bf16.mxu0 0
    %299 = vmatpush1.bf16.msra.mxu0 0
    %300 = vmatprep.subr.bf16.mxu0 0
    %301 = vmatpush1.bf16.msra.mxu0 0
    %302 = vmatprep.subr.bf16.mxu0 0
    %303 = vmatpush1.bf16.msra.mxu0 0
    %304 = vmatprep.subr.bf16.mxu0 0
    %305 = vmatpush1.bf16.msra.mxu0 0
    %306 = vmatprep.subr.bf16.mxu0 0
    %307 = vmatpush1.bf16.msra.mxu0 0
    %308 = vmatprep.mubr.bf16.mxu0 0
    %309 = vmatmul.mubr.bf16.gmra.mrb[0].mxu0 %v271
    %v310 = vpop.f32.mrb[0].mxu0
    %v311 = vadd.f32 0.0, %v310
    %v312 = vpop.f32.mrb[0].mxu0
    %v313 = vpop.f32.mrb[0].mxu0
    %v314 = vadd.f32 0.0, %v313
    %v315 = vpop.f32.mrb[0].mxu0
    %316 = vmatprep.mubr.bf16.mxu0 0
    %317 = vmatmul.mubr.bf16.gmra.mrb[0].mxu0 %v274
    %v318 = vpop.f32.mrb[0].mxu0
    %v319 = vadd.f32 0.0, %v318
    %v320 = vpop.f32.mrb[0].mxu0
    %v321 = vpop.f32.mrb[0].mxu0
    %v322 = vadd.f32 0.0, %v321
    %v323 = vpop.f32.mrb[0].mxu0
    %324 = vdwg.mxu0
    %v331 = vunpack.c.l.b16 %v236
    %v332 = vunpack.c.l.b16 %v237
    %v333 = vunpack.c.l.b16 %v238
    %v334 = vunpack.c.l.b16 %v239
    %v335 = vunpack.c.l.b16 %v240
    %v336 = vunpack.c.l.b16 %v241
    %v337 = vpack.c.b16 %v332, %v331
    %v338 = vpack.c.b16 %v334, %v333
    %v339 = vpack.c.b16 %v336, %v335
    %v344 = vsel %vm269, %v242, 0
    %v347 = vsel %vm269, %v243, 0
    %349 = vmatprep.subr.bf16.mxu0 0
    %350 = vmatpush1.bf16.msra.mxu0 %v337
    %351 = vmatprep.subr.bf16.mxu0 0
    %352 = vmatpush1.bf16.msra.mxu0 %v338
    %353 = vmatprep.subr.bf16.mxu0 0
    %354 = vmatpush1.bf16.msra.mxu0 %v339
    %355 = vmatprep.subr.bf16.mxu0 0
    %356 = vmatpush1.bf16.msra.mxu0 0
    %357 = vmatprep.subr.bf16.mxu0 0
    %358 = vmatpush1.bf16.msra.mxu0 0
    %359 = vmatprep.subr.bf16.mxu0 0
    %360 = vmatpush1.bf16.msra.mxu0 0
    %361 = vmatprep.subr.bf16.mxu0 0
    %362 = vmatpush1.bf16.msra.mxu0 0
    %363 = vmatprep.subr.bf16.mxu0 0
    %364 = vmatpush1.bf16.msra.mxu0 0
    %365 = vmatprep.subr.bf16.mxu0 0
    %366 = vmatpush1.bf16.msra.mxu0 0
    %367 = vmatprep.subr.bf16.mxu0 0
    %368 = vmatpush1.bf16.msra.mxu0 0
    %369 = vmatprep.subr.bf16.mxu0 0
    %370 = vmatpush1.bf16.msra.mxu0 0
    %371 = vmatprep.subr.bf16.mxu0 0
    %372 = vmatpush1.bf16.msra.mxu0 0
    %373 = vmatprep.subr.bf16.mxu0 0
    %374 = vmatpush1.bf16.msra.mxu0 0
    %375 = vmatprep.subr.bf16.mxu0 0
    %376 = vmatpush1.bf16.msra.mxu0 0
    %377 = vmatprep.subr.bf16.mxu0 0
    %378 = vmatpush1.bf16.msra.mxu0 0
    %379 = vmatprep.subr.bf16.mxu0 0
    %380 = vmatpush1.bf16.msra.mxu0 0
    %381 = vmatprep.mubr.bf16.mxu0 0
    %382 = vmatmul.mubr.bf16.gmra.mrb[0].mxu0 %v344
    %v383 = vpop.f32.mrb[0].mxu0
    %v384 = vadd.f32 %v311, %v383
    %v385 = vpop.f32.mrb[0].mxu0
    %v386 = vpop.f32.mrb[0].mxu0
    %v387 = vadd.f32 %v314, %v386
    %v388 = vpop.f32.mrb[0].mxu0
    %389 = vmatprep.mubr.bf16.mxu0 0
    %390 = vmatmul.mubr.bf16.gmra.mrb[0].mxu0 %v347
    %v391 = vpop.f32.mrb[0].mxu0
    %v392 = vadd.f32 %v319, %v391
    %v393 = vpop.f32.mrb[0].mxu0
    %v394 = vpop.f32.mrb[0].mxu0
    %v395 = vadd.f32 %v322, %v394
    %v396 = vpop.f32.mrb[0].mxu0
    %397 = vdwg.mxu0
    %s398 = scalar_lea.vmem %s2, 48
    %v399 = vld [vmem:[%s398] sm:$0xf]
    %v400 = vld [vmem:[%s398 + $0x4] sm:$0xf]
    %v401 = vld [vmem:[%s398 + $0x8] sm:$0xf]
    %v402 = vld [vmem:[%s398 + $0xc] sm:$0xf]
    %v403 = vld [vmem:[%s398 + $0x10] sm:$0xf]
    %v404 = vld [vmem:[%s398 + $0x14] sm:$0xf]
    %v405 = vpack.c.bf16 %v225, %v222
    %v406 = vpack.c.bf16 %v233, %v230
    %v413 = vunpack.c.l.b16 %v399
    %v414 = vunpack.c.l.b16 %v400
    %v415 = vunpack.c.l.b16 %v401
    %v416 = vunpack.c.l.b16 %v402
    %v417 = vunpack.c.l.b16 %v403
    %v418 = vunpack.c.l.b16 %v404
    %v419 = vpack.c.b16 %v414, %v413
    %v420 = vpack.c.b16 %v416, %v415
    %v421 = vpack.c.b16 %v418, %v417
    %v426 = vsel %vm269, %v405, 0
    %v429 = vsel %vm269, %v406, 0
    %431 = vmatprep.subr.bf16.mxu0 0
    %432 = vmatpush1.bf16.msra.mxu0 %v419
    %433 = vmatprep.subr.bf16.mxu0 0
    %434 = vmatpush1.bf16.msra.mxu0 %v420
    %435 = vmatprep.subr.bf16.mxu0 0
    %436 = vmatpush1.bf16.msra.mxu0 %v421
    %437 = vmatprep.subr.bf16.mxu0 0
    %438 = vmatpush1.bf16.msra.mxu0 0
    %439 = vmatprep.subr.bf16.mxu0 0
    %440 = vmatpush1.bf16.msra.mxu0 0
    %441 = vmatprep.subr.bf16.mxu0 0
    %442 = vmatpush1.bf16.msra.mxu0 0
    %443 = vmatprep.subr.bf16.mxu0 0
    %444 = vmatpush1.bf16.msra.mxu0 0
    %445 = vmatprep.subr.bf16.mxu0 0
    %446 = vmatpush1.bf16.msra.mxu0 0
    %447 = vmatprep.subr.bf16.mxu0 0
    %448 = vmatpush1.bf16.msra.mxu0 0
    %449 = vmatprep.subr.bf16.mxu0 0
    %450 = vmatpush1.bf16.msra.mxu0 0
    %451 = vmatprep.subr.bf16.mxu0 0
    %452 = vmatpush1.bf16.msra.mxu0 0
    %453 = vmatprep.subr.bf16.mxu0 0
    %454 = vmatpush1.bf16.msra.mxu0 0
    %455 = vmatprep.subr.bf16.mxu0 0
    %456 = vmatpush1.bf16.msra.mxu0 0
    %457 = vmatprep.subr.bf16.mxu0 0
    %458 = vmatpush1.bf16.msra.mxu0 0
    %459 = vmatprep.subr.bf16.mxu0 0
    %460 = vmatpush1.bf16.msra.mxu0 0
    %461 = vmatprep.subr.bf16.mxu0 0
    %462 = vmatpush1.bf16.msra.mxu0 0
    %463 = vmatprep.mubr.bf16.mxu0 0
    %464 = vmatmul.mubr.bf16.gmra.mrb[0].mxu0 %v426
    %v465 = vpop.f32.mrb[0].mxu0
    %v466 = vadd.f32 0.0, %v465
    %v467 = vpop.f32.mrb[0].mxu0
    %v468 = vpop.f32.mrb[0].mxu0
    %v469 = vadd.f32 0.0, %v468
    %v470 = vpop.f32.mrb[0].mxu0
    %471 = vmatprep.mubr.bf16.mxu0 0
    %472 = vmatmul.mubr.bf16.gmra.mrb[0].mxu0 %v429
    %v473 = vpop.f32.mrb[0].mxu0
    %v474 = vadd.f32 0.0, %v473
    %v475 = vpop.f32.mrb[0].mxu0
    %v476 = vpop.f32.mrb[0].mxu0
    %v477 = vadd.f32 0.0, %v476
    %v478 = vpop.f32.mrb[0].mxu0
    %479 = vdwg.mxu0
    %v480 = vadd.f32 %v384, %v466
    %v481 = vadd.f32 %v387, %v469
    %v482 = vadd.f32 %v392, %v474
    %v483 = vadd.f32 %v395, %v477
    %v484 = vld [vmem:[%s6] sm:$0x1]
    %v486 = vlaneseq
    %v487 = vshrl.u32 %v486, 7
    %v488 = vsub.s32 0, %v487
    %v489 = vrot.slane %v484, %v488
    %v491 = vadd.f32 %v480, %v489
    %v492 = vadd.f32 %v481, %v489
    %v493 = vadd.f32 %v482, %v489
    %v494 = vadd.f32 %v483, %v489
    %v495 = vmax.f32 %v491, 0.0
    %v496 = vmax.f32 %v492, 0.0
    %v497 = vmax.f32 %v493, 0.0
    %v498 = vmax.f32 %v494, 0.0
    %v499 = vld [vmem:[%s4] sm:$0xf]
    %v500 = vld [vmem:[%s4 + $0x4] sm:$0xf]
    %v501 = vld [vmem:[%s4 + $0x8] sm:$0xf]
    %v502 = vld [vmem:[%s4 + $0xc] sm:$0xf]
    %v503 = vld [vmem:[%s4 + $0x10] sm:$0xf]
    %v504 = vld [vmem:[%s4 + $0x14] sm:$0xf]
    %v505 = vld [vmem:[%s4 + $0x18] sm:$0xf]
    %v506 = vld [vmem:[%s4 + $0x1c] sm:$0xf]
    %v507 = vld [vmem:[%s4 + $0x20] sm:$0xf]
    %v508 = vld [vmem:[%s4 + $0x24] sm:$0xf]
    %v509 = vld [vmem:[%s4 + $0x28] sm:$0xf]
    %v510 = vld [vmem:[%s4 + $0x2c] sm:$0xf]
    %v511 = vld [vmem:[%s4 + $0x30] sm:$0xf]
    %v512 = vld [vmem:[%s4 + $0x34] sm:$0xf]
    %v513 = vld [vmem:[%s4 + $0x38] sm:$0xf]
    %v514 = vld [vmem:[%s4 + $0x3c] sm:$0xf]
    %v515 = vpack.c.bf16 %v496, %v495
    %v516 = vpack.c.bf16 %v498, %v497
    %v533 = vunpack.c.l.b16 %v499
    %v534 = vunpack.c.l.b16 %v500
    %v535 = vunpack.c.l.b16 %v501
    %v536 = vunpack.c.l.b16 %v502
    %v537 = vunpack.c.l.b16 %v503
    %v538 = vunpack.c.l.b16 %v504
    %v539 = vunpack.c.l.b16 %v505
    %v540 = vunpack.c.l.b16 %v506
    %v541 = vunpack.c.l.b16 %v507
    %v542 = vunpack.c.l.b16 %v508
    %v543 = vunpack.c.l.b16 %v509
    %v544 = vunpack.c.l.b16 %v510
    %v545 = vunpack.c.l.b16 %v511
    %v546 = vunpack.c.l.b16 %v512
    %v547 = vunpack.c.l.b16 %v513
    %v548 = vunpack.c.l.b16 %v514
    %v549 = vpack.c.b16 %v534, %v533
    %v550 = vpack.c.b16 %v536, %v535
    %v551 = vpack.c.b16 %v538, %v537
    %v552 = vpack.c.b16 %v540, %v539
    %v553 = vpack.c.b16 %v542, %v541
    %v554 = vpack.c.b16 %v544, %v543
    %v555 = vpack.c.b16 %v546, %v545
    %v556 = vpack.c.b16 %v548, %v547
    %565 = vmatprep.subr.bf16.mxu0 0
    %566 = vmatpush1.bf16.msra.mxu0 %v549
    %567 = vmatprep.subr.bf16.mxu0 0
    %568 = vmatpush1.bf16.msra.mxu0 %v550
    %569 = vmatprep.subr.bf16.mxu0 0
    %570 = vmatpush1.bf16.msra.mxu0 %v551
    %571 = vmatprep.subr.bf16.mxu0 0
    %572 = vmatpush1.bf16.msra.mxu0 %v552
    %573 = vmatprep.subr.bf16.mxu0 0
    %574 = vmatpush1.bf16.msra.mxu0 %v553
    %575 = vmatprep.subr.bf16.mxu0 0
    %576 = vmatpush1.bf16.msra.mxu0 %v554
    %577 = vmatprep.subr.bf16.mxu0 0
    %578 = vmatpush1.bf16.msra.mxu0 %v555
    %579 = vmatprep.subr.bf16.mxu0 0
    %580 = vmatpush1.bf16.msra.mxu0 %v556
    %581 = vmatprep.subr.bf16.mxu0 0
    %582 = vmatpush1.bf16.msra.mxu0 0
    %583 = vmatprep.subr.bf16.mxu0 0
    %584 = vmatpush1.bf16.msra.mxu0 0
    %585 = vmatprep.subr.bf16.mxu0 0
    %586 = vmatpush1.bf16.msra.mxu0 0
    %587 = vmatprep.subr.bf16.mxu0 0
    %588 = vmatpush1.bf16.msra.mxu0 0
    %589 = vmatprep.subr.bf16.mxu0 0
    %590 = vmatpush1.bf16.msra.mxu0 0
    %591 = vmatprep.subr.bf16.mxu0 0
    %592 = vmatpush1.bf16.msra.mxu0 0
    %593 = vmatprep.subr.bf16.mxu0 0
    %594 = vmatpush1.bf16.msra.mxu0 0
    %595 = vmatprep.subr.bf16.mxu0 0
    %596 = vmatpush1.bf16.msra.mxu0 0
    %597 = vmatprep.mubr.bf16.mxu0 0
    %598 = vmatmul.mubr.bf16.gmra.mrb[0].mxu0 %v515
    %v599 = vpop.f32.mrb[0].mxu0
    %v600 = vadd.f32 0.0, %v599
    %v601 = vpop.f32.mrb[0].mxu0
    %v602 = vpop.f32.mrb[0].mxu0
    %v603 = vadd.f32 0.0, %v602
    %v604 = vpop.f32.mrb[0].mxu0
    %605 = vmatprep.mubr.bf16.mxu0 0
    %606 = vmatmul.mubr.bf16.gmra.mrb[0].mxu0 %v516
    %v607 = vpop.f32.mrb[0].mxu0
    %v608 = vadd.f32 0.0, %v607
    %v609 = vpop.f32.mrb[0].mxu0
    %v610 = vpop.f32.mrb[0].mxu0
    %v611 = vadd.f32 0.0, %v610
    %v612 = vpop.f32.mrb[0].mxu0
    %613 = vdwg.mxu0
    %s614 = scalar_lea.vmem %s4, 64
    %v615 = vld [vmem:[%s614] sm:$0xf]
    %v616 = vld [vmem:[%s614 + $0x4] sm:$0xf]
    %v617 = vld [vmem:[%s614 + $0x8] sm:$0xf]
    %v618 = vld [vmem:[%s614 + $0xc] sm:$0xf]
    %v619 = vld [vmem:[%s614 + $0x10] sm:$0xf]
    %v620 = vld [vmem:[%s614 + $0x14] sm:$0xf]
    %v621 = vld [vmem:[%s614 + $0x18] sm:$0xf]
    %v622 = vld [vmem:[%s614 + $0x1c] sm:$0xf]
    %v623 = vld [vmem:[%s614 + $0x20] sm:$0xf]
    %v624 = vld [vmem:[%s614 + $0x24] sm:$0xf]
    %v625 = vld [vmem:[%s614 + $0x28] sm:$0xf]
    %v626 = vld [vmem:[%s614 + $0x2c] sm:$0xf]
    %v627 = vld [vmem:[%s614 + $0x30] sm:$0xf]
    %v628 = vld [vmem:[%s614 + $0x34] sm:$0xf]
    %v629 = vld [vmem:[%s614 + $0x38] sm:$0xf]
    %v630 = vld [vmem:[%s614 + $0x3c] sm:$0xf]
    %v647 = vunpack.c.l.b16 %v615
    %v648 = vunpack.c.l.b16 %v616
    %v649 = vunpack.c.l.b16 %v617
    %v650 = vunpack.c.l.b16 %v618
    %v651 = vunpack.c.l.b16 %v619
    %v652 = vunpack.c.l.b16 %v620
    %v653 = vunpack.c.l.b16 %v621
    %v654 = vunpack.c.l.b16 %v622
    %v655 = vunpack.c.l.b16 %v623
    %v656 = vunpack.c.l.b16 %v624
    %v657 = vunpack.c.l.b16 %v625
    %v658 = vunpack.c.l.b16 %v626
    %v659 = vunpack.c.l.b16 %v627
    %v660 = vunpack.c.l.b16 %v628
    %v661 = vunpack.c.l.b16 %v629
    %v662 = vunpack.c.l.b16 %v630
    %v663 = vpack.c.b16 %v648, %v647
    %v664 = vpack.c.b16 %v650, %v649
    %v665 = vpack.c.b16 %v652, %v651
    %v666 = vpack.c.b16 %v654, %v653
    %v667 = vpack.c.b16 %v656, %v655
    %v668 = vpack.c.b16 %v658, %v657
    %v669 = vpack.c.b16 %v660, %v659
    %v670 = vpack.c.b16 %v662, %v661
    %679 = vmatprep.subr.bf16.mxu0 0
    %680 = vmatpush1.bf16.msra.mxu0 %v663
    %681 = vmatprep.subr.bf16.mxu0 0
    %682 = vmatpush1.bf16.msra.mxu0 %v664
    %683 = vmatprep.subr.bf16.mxu0 0
    %684 = vmatpush1.bf16.msra.mxu0 %v665
    %685 = vmatprep.subr.bf16.mxu0 0
    %686 = vmatpush1.bf16.msra.mxu0 %v666
    %687 = vmatprep.subr.bf16.mxu0 0
    %688 = vmatpush1.bf16.msra.mxu0 %v667
    %689 = vmatprep.subr.bf16.mxu0 0
    %690 = vmatpush1.bf16.msra.mxu0 %v668
    %691 = vmatprep.subr.bf16.mxu0 0
    %692 = vmatpush1.bf16.msra.mxu0 %v669
    %693 = vmatprep.subr.bf16.mxu0 0
    %694 = vmatpush1.bf16.msra.mxu0 %v670
    %695 = vmatprep.subr.bf16.mxu0 0
    %696 = vmatpush1.bf16.msra.mxu0 0
    %697 = vmatprep.subr.bf16.mxu0 0
    %698 = vmatpush1.bf16.msra.mxu0 0
    %699 = vmatprep.subr.bf16.mxu0 0
    %700 = vmatpush1.bf16.msra.mxu0 0
    %701 = vmatprep.subr.bf16.mxu0 0
    %702 = vmatpush1.bf16.msra.mxu0 0
    %703 = vmatprep.subr.bf16.mxu0 0
    %704 = vmatpush1.bf16.msra.mxu0 0
    %705 = vmatprep.subr.bf16.mxu0 0
    %706 = vmatpush1.bf16.msra.mxu0 0
    %707 = vmatprep.subr.bf16.mxu0 0
    %708 = vmatpush1.bf16.msra.mxu0 0
    %709 = vmatprep.subr.bf16.mxu0 0
    %710 = vmatpush1.bf16.msra.mxu0 0
    %711 = vmatprep.mubr.bf16.mxu0 0
    %712 = vmatmul.mubr.bf16.gmra.mrb[0].mxu0 %v515
    %v713 = vpop.f32.mrb[0].mxu0
    %v714 = vadd.f32 0.0, %v713
    %v715 = vpop.f32.mrb[0].mxu0
    %v716 = vpop.f32.mrb[0].mxu0
    %v717 = vadd.f32 0.0, %v716
    %v718 = vpop.f32.mrb[0].mxu0
    %719 = vmatprep.mubr.bf16.mxu0 0
    %720 = vmatmul.mubr.bf16.gmra.mrb[0].mxu0 %v516
    %v721 = vpop.f32.mrb[0].mxu0
    %v722 = vadd.f32 0.0, %v721
    %v723 = vpop.f32.mrb[0].mxu0
    %v724 = vpop.f32.mrb[0].mxu0
    %v725 = vadd.f32 0.0, %v724
    %v726 = vpop.f32.mrb[0].mxu0
    %727 = vdwg.mxu0
    %v728 = vmax.f32 %v600, %v714
    %v729 = vmax.f32 %v603, %v717
    %v730 = vmax.f32 %v608, %v722
    %v731 = vmax.f32 %v611, %v725
    %v732 = vld [vmem:[%s5] sm:$0xf]
    %v733 = vld [vmem:[%s5 + $0x4] sm:$0xf]
    %v734 = vpack.c.bf16 %v729, %v728
    %v735 = vpack.c.bf16 %v731, %v730
    %v738 = vunpack.c.l.b16 %v732
    %v739 = vunpack.c.l.b16 %v733
    %v740 = vpack.c.b16 %v739, %v738
    %v742 = vsel %vm110, %v740, 0
    %744 = vmatprep.subr.bf16.mxu0 0
    %745 = vmatpush1.bf16.msra.mxu0 %v734
    %746 = vmatprep.subr.bf16.mxu0 0
    %747 = vmatpush1.bf16.msra.mxu0 %v735
    %748 = vmatprep.subr.bf16.mxu0 0
    %749 = vmatpush1.bf16.msra.mxu0 0
    %750 = vmatprep.subr.bf16.mxu0 0
    %751 = vmatpush1.bf16.msra.mxu0 0
    %752 = vmatprep.subr.bf16.mxu0 0
    %753 = vmatpush1.bf16.msra.mxu0 0
    %754 = vmatprep.subr.bf16.mxu0 0
    %755 = vmatpush1.bf16.msra.mxu0 0
    %756 = vmatprep.subr.bf16.mxu0 0
    %757 = vmatpush1.bf16.msra.mxu0 0
    %758 = vmatprep.subr.bf16.mxu0 0
    %759 = vmatpush1.bf16.msra.mxu0 0
    %760 = vmatprep.subr.bf16.mxu0 0
    %761 = vmatpush1.bf16.msra.mxu0 0
    %762 = vmatprep.subr.bf16.mxu0 0
    %763 = vmatpush1.bf16.msra.mxu0 0
    %764 = vmatprep.subr.bf16.mxu0 0
    %765 = vmatpush1.bf16.msra.mxu0 0
    %766 = vmatprep.subr.bf16.mxu0 0
    %767 = vmatpush1.bf16.msra.mxu0 0
    %768 = vmatprep.subr.bf16.mxu0 0
    %769 = vmatpush1.bf16.msra.mxu0 0
    %770 = vmatprep.subr.bf16.mxu0 0
    %771 = vmatpush1.bf16.msra.mxu0 0
    %772 = vmatprep.subr.bf16.mxu0 0
    %773 = vmatpush1.bf16.msra.mxu0 0
    %774 = vmatprep.subr.bf16.mxu0 0
    %775 = vmatpush1.bf16.msra.mxu0 0
    %776 = vmatprep.mubr.bf16.mxu0 0
    %777 = vmatmul.mubr.bf16.gmra.mrb[0].mxu0 %v742
    %v778 = vpop.f32.mrb[0].mxu0
    %v779 = vadd.f32 0.0, %v778
    %v780 = vpop.f32.mrb[0].mxu0
    %v781 = vpop.f32.mrb[0].mxu0
    %v782 = vadd.f32 0.0, %v781
    %v783 = vpop.f32.mrb[0].mxu0
    %784 = vdwg.mxu0
    %s785 = scalar_lea.vmem %s5, 8
    %v786 = vld [vmem:[%s785] sm:$0xf]
    %v787 = vld [vmem:[%s785 + $0x4] sm:$0xf]
    %v790 = vunpack.c.l.b16 %v786
    %v791 = vunpack.c.l.b16 %v787
    %v792 = vpack.c.b16 %v791, %v790
    %v794 = vsel %vm110, %v792, 0
    %796 = vmatprep.subr.bf16.mxu0 0
    %797 = vmatpush1.bf16.msra.mxu0 %v734
    %798 = vmatprep.subr.bf16.mxu0 0
    %799 = vmatpush1.bf16.msra.mxu0 %v735
    %800 = vmatprep.subr.bf16.mxu0 0
    %801 = vmatpush1.bf16.msra.mxu0 0
    %802 = vmatprep.subr.bf16.mxu0 0
    %803 = vmatpush1.bf16.msra.mxu0 0
    %804 = vmatprep.subr.bf16.mxu0 0
    %805 = vmatpush1.bf16.msra.mxu0 0
    %806 = vmatprep.subr.bf16.mxu0 0
    %807 = vmatpush1.bf16.msra.mxu0 0
    %808 = vmatprep.subr.bf16.mxu0 0
    %809 = vmatpush1.bf16.msra.mxu0 0
    %810 = vmatprep.subr.bf16.mxu0 0
    %811 = vmatpush1.bf16.msra.mxu0 0
    %812 = vmatprep.subr.bf16.mxu0 0
    %813 = vmatpush1.bf16.msra.mxu0 0
    %814 = vmatprep.subr.bf16.mxu0 0
    %815 = vmatpush1.bf16.msra.mxu0 0
    %816 = vmatprep.subr.bf16.mxu0 0
    %817 = vmatpush1.bf16.msra.mxu0 0
    %818 = vmatprep.subr.bf16.mxu0 0
    %819 = vmatpush1.bf16.msra.mxu0 0
    %820 = vmatprep.subr.bf16.mxu0 0
    %821 = vmatpush1.bf16.msra.mxu0 0
    %822 = vmatprep.subr.bf16.mxu0 0
    %823 = vmatpush1.bf16.msra.mxu0 0
    %824 = vmatprep.subr.bf16.mxu0 0
    %825 = vmatpush1.bf16.msra.mxu0 0
    %826 = vmatprep.subr.bf16.mxu0 0
    %827 = vmatpush1.bf16.msra.mxu0 0
    %828 = vmatprep.mubr.bf16.mxu0 0
    %829 = vmatmul.mubr.bf16.gmra.mrb[0].mxu0 %v794
    %v830 = vpop.f32.mrb[0].mxu0
    %v831 = vadd.f32 0.0, %v830
    %v832 = vpop.f32.mrb[0].mxu0
    %v833 = vpop.f32.mrb[0].mxu0
    %v834 = vadd.f32 0.0, %v833
    %v835 = vpop.f32.mrb[0].mxu0
    %836 = vdwg.mxu0
    %v837 = vmax.f32 %v779, %v831
    %v838 = vmax.f32 %v782, %v834
    %v839 = vld [vmem:[%s8] sm:$0xf]
    %v840 = vld [vmem:[%s8 + $0x4] sm:$0xf]
    %v841 = vpack.c.bf16 %v838, %v837
    %v844 = vunpack.c.l.b16 %v839
    %v845 = vunpack.c.l.b16 %v840
    %v846 = vpack.c.b16 %v845, %v844
    %vm847 = vcmask 130048
    %v849 = vsel %vm847, %v846, 0
    %851 = vmatprep.subr.bf16.mxu0 0
    %852 = vmatpush1.bf16.msra.mxu0 %v841
    %853 = vmatprep.subr.bf16.mxu0 0
    %854 = vmatpush1.bf16.msra.mxu0 0
    %855 = vmatprep.subr.bf16.mxu0 0
    %856 = vmatpush1.bf16.msra.mxu0 0
    %857 = vmatprep.subr.bf16.mxu0 0
    %858 = vmatpush1.bf16.msra.mxu0 0
    %859 = vmatprep.subr.bf16.mxu0 0
    %860 = vmatpush1.bf16.msra.mxu0 0
    %861 = vmatprep.subr.bf16.mxu0 0
    %862 = vmatpush1.bf16.msra.mxu0 0
    %863 = vmatprep.subr.bf16.mxu0 0
    %864 = vmatpush1.bf16.msra.mxu0 0
    %865 = vmatprep.subr.bf16.mxu0 0
    %866 = vmatpush1.bf16.msra.mxu0 0
    %867 = vmatprep.subr.bf16.mxu0 0
    %868 = vmatpush1.bf16.msra.mxu0 0
    %869 = vmatprep.subr.bf16.mxu0 0
    %870 = vmatpush1.bf16.msra.mxu0 0
    %871 = vmatprep.subr.bf16.mxu0 0
    %872 = vmatpush1.bf16.msra.mxu0 0
    %873 = vmatprep.subr.bf16.mxu0 0
    %874 = vmatpush1.bf16.msra.mxu0 0
    %875 = vmatprep.subr.bf16.mxu0 0
    %876 = vmatpush1.bf16.msra.mxu0 0
    %877 = vmatprep.subr.bf16.mxu0 0
    %878 = vmatpush1.bf16.msra.mxu0 0
    %879 = vmatprep.subr.bf16.mxu0 0
    %880 = vmatpush1.bf16.msra.mxu0 0
    %881 = vmatprep.subr.bf16.mxu0 0
    %882 = vmatpush1.bf16.msra.mxu0 0
    %883 = vmatprep.mubr.bf16.mxu0 0
    %884 = vmatmul.mubr.bf16.gmra.mrb[0].mxu0 %v849
    %v885 = vpop.f32.mrb[0].mxu0
    %v886 = vadd.f32 0.0, %v885
    %v887 = vpop.f32.mrb[0].mxu0
    %v888 = vpop.f32.mrb[0].mxu0
    %v889 = vadd.f32 0.0, %v888
    %v890 = vpop.f32.mrb[0].mxu0
    %891 = vdwg.mxu0
    %s892 = scalar_lea.vmem %s8, 8
    %v893 = vld [vmem:[%s892] sm:$0xf]
    %v894 = vld [vmem:[%s892 + $0x4] sm:$0xf]
    %v897 = vunpack.c.l.b16 %v893
    %v898 = vunpack.c.l.b16 %v894
    %v899 = vpack.c.b16 %v898, %v897
    %v901 = vsel %vm847, %v899, 0
    %903 = vmatprep.subr.bf16.mxu0 0
    %904 = vmatpush1.bf16.msra.mxu0 %v841
    %905 = vmatprep.subr.bf16.mxu0 0
    %906 = vmatpush1.bf16.msra.mxu0 0
    %907 = vmatprep.subr.bf16.mxu0 0
    %908 = vmatpush1.bf16.msra.mxu0 0
    %909 = vmatprep.subr.bf16.mxu0 0
    %910 = vmatpush1.bf16.msra.mxu0 0
    %911 = vmatprep.subr.bf16.mxu0 0
    %912 = vmatpush1.bf16.msra.mxu0 0
    %913 = vmatprep.subr.bf16.mxu0 0
    %914 = vmatpush1.bf16.msra.mxu0 0
    %915 = vmatprep.subr.bf16.mxu0 0
    %916 = vmatpush1.bf16.msra.mxu0 0
    %917 = vmatprep.subr.bf16.mxu0 0
    %918 = vmatpush1.bf16.msra.mxu0 0
    %919 = vmatprep.subr.bf16.mxu0 0
    %920 = vmatpush1.bf16.msra.mxu0 0
    %921 = vmatprep.subr.bf16.mxu0 0
    %922 = vmatpush1.bf16.msra.mxu0 0
    %923 = vmatprep.subr.bf16.mxu0 0
    %924 = vmatpush1.bf16.msra.mxu0 0
    %925 = vmatprep.subr.bf16.mxu0 0
    %926 = vmatpush1.bf16.msra.mxu0 0
    %927 = vmatprep.subr.bf16.mxu0 0
    %928 = vmatpush1.bf16.msra.mxu0 0
    %929 = vmatprep.subr.bf16.mxu0 0
    %930 = vmatpush1.bf16.msra.mxu0 0
    %931 = vmatprep.subr.bf16.mxu0 0
    %932 = vmatpush1.bf16.msra.mxu0 0
    %933 = vmatprep.subr.bf16.mxu0 0
    %934 = vmatpush1.bf16.msra.mxu0 0
    %935 = vmatprep.mubr.bf16.mxu0 0
    %936 = vmatmul.mubr.bf16.gmra.mrb[0].mxu0 %v901
    %v937 = vpop.f32.mrb[0].mxu0
    %v938 = vadd.f32 0.0, %v937
    %v939 = vpop.f32.mrb[0].mxu0
    %v940 = vpop.f32.mrb[0].mxu0
    %v941 = vadd.f32 0.0, %v940
    %v942 = vpop.f32.mrb[0].mxu0
    %943 = vdwg.mxu0
    %v944 = vld [vmem:[%s7] sm:$0xf]
    %v945 = vld [vmem:[%s7 + $0x4] sm:$0xf]
    %v946 = vld [vmem:[%s7 + $0x8] sm:$0xf]
    %v947 = vld [vmem:[%s7 + $0xc] sm:$0xf]
    %v948 = vld [vmem:[%s7 + $0x10] sm:$0xf]
    %v949 = vld [vmem:[%s7 + $0x14] sm:$0xf]
    %v950 = vld [vmem:[%s7 + $0x18] sm:$0xf]
    %v951 = vld [vmem:[%s7 + $0x1c] sm:$0xf]
    %v952 = vpack.c.bf16 %v889, %v886
    %s953 = scalar_lea.vmem %s7, 32
    %v954 = vld [vmem:[%s953] sm:$0xf]
    %v955 = vld [vmem:[%s953 + $0x4] sm:$0xf]
    %v956 = vld [vmem:[%s953 + $0x8] sm:$0xf]
    %v957 = vld [vmem:[%s953 + $0xc] sm:$0xf]
    %v958 = vld [vmem:[%s953 + $0x10] sm:$0xf]
    %v959 = vld [vmem:[%s953 + $0x14] sm:$0xf]
    %v960 = vld [vmem:[%s953 + $0x18] sm:$0xf]
    %v961 = vld [vmem:[%s953 + $0x1c] sm:$0xf]
    %v970 = vunpack.c.l.b16 %v954
    %v971 = vunpack.c.l.b16 %v955
    %v972 = vunpack.c.l.b16 %v956
    %v973 = vunpack.c.l.b16 %v957
    %v974 = vunpack.c.l.b16 %v958
    %v975 = vunpack.c.l.b16 %v959
    %v976 = vunpack.c.l.b16 %v960
    %v977 = vunpack.c.l.b16 %v961
    %v978 = vpack.c.b16 %v971, %v970
    %v979 = vpack.c.b16 %v973, %v972
    %v980 = vpack.c.b16 %v975, %v974
    %v981 = vpack.c.b16 %v977, %v976
    %vm986 = vcmask 523264
    %v988 = vsel %vm986, %v841, 0
    %990 = vmatprep.subr.bf16.mxu0 0
    %991 = vmatpush1.bf16.msra.mxu0 %v978
    %992 = vmatprep.subr.bf16.mxu0 0
    %993 = vmatpush1.bf16.msra.mxu0 %v979
    %994 = vmatprep.subr.bf16.mxu0 0
    %995 = vmatpush1.bf16.msra.mxu0 %v980
    %996 = vmatprep.subr.bf16.mxu0 0
    %997 = vmatpush1.bf16.msra.mxu0 %v981
    %998 = vmatprep.subr.bf16.mxu0 0
    %999 = vmatpush1.bf16.msra.mxu0 0
    %1000 = vmatprep.subr.bf16.mxu0 0
    %1001 = vmatpush1.bf16.msra.mxu0 0
    %1002 = vmatprep.subr.bf16.mxu0 0
    %1003 = vmatpush1.bf16.msra.mxu0 0
    %1004 = vmatprep.subr.bf16.mxu0 0
    %1005 = vmatpush1.bf16.msra.mxu0 0
    %1006 = vmatprep.subr.bf16.mxu0 0
    %1007 = vmatpush1.bf16.msra.mxu0 0
    %1008 = vmatprep.subr.bf16.mxu0 0
    %1009 = vmatpush1.bf16.msra.mxu0 0
    %1010 = vmatprep.subr.bf16.mxu0 0
    %1011 = vmatpush1.bf16.msra.mxu0 0
    %1012 = vmatprep.subr.bf16.mxu0 0
    %1013 = vmatpush1.bf16.msra.mxu0 0
    %1014 = vmatprep.subr.bf16.mxu0 0
    %1015 = vmatpush1.bf16.msra.mxu0 0
    %1016 = vmatprep.subr.bf16.mxu0 0
    %1017 = vmatpush1.bf16.msra.mxu0 0
    %1018 = vmatprep.subr.bf16.mxu0 0
    %1019 = vmatpush1.bf16.msra.mxu0 0
    %1020 = vmatprep.subr.bf16.mxu0 0
    %1021 = vmatpush1.bf16.msra.mxu0 0
    %1022 = vmatprep.mubr.bf16.mxu0 0
    %1023 = vmatmul.mubr.bf16.gmra.mrb[0].mxu0 %v988
    %v1024 = vpop.f32.mrb[0].mxu0
    %v1025 = vadd.f32 0.0, %v1024
    %v1026 = vpop.f32.mrb[0].mxu0
    %v1027 = vpop.f32.mrb[0].mxu0
    %v1028 = vadd.f32 0.0, %v1027
    %v1029 = vpop.f32.mrb[0].mxu0
    %1030 = vdwg.mxu0
    %v1039 = vunpack.c.l.b16 %v944
    %v1040 = vunpack.c.l.b16 %v945
    %v1041 = vunpack.c.l.b16 %v946
    %v1042 = vunpack.c.l.b16 %v947
    %v1043 = vunpack.c.l.b16 %v948
    %v1044 = vunpack.c.l.b16 %v949
    %v1045 = vunpack.c.l.b16 %v950
    %v1046 = vunpack.c.l.b16 %v951
    %v1047 = vpack.c.b16 %v1040, %v1039
    %v1048 = vpack.c.b16 %v1042, %v1041
    %v1049 = vpack.c.b16 %v1044, %v1043
    %v1050 = vpack.c.b16 %v1046, %v1045
    %v1056 = vsel %vm986, %v952, 0
    %1058 = vmatprep.subr.bf16.mxu0 0
    %1059 = vmatpush1.bf16.msra.mxu0 %v1047
    %1060 = vmatprep.subr.bf16.mxu0 0
    %1061 = vmatpush1.bf16.msra.mxu0 %v1048
    %1062 = vmatprep.subr.bf16.mxu0 0
    %1063 = vmatpush1.bf16.msra.mxu0 %v1049
    %1064 = vmatprep.subr.bf16.mxu0 0
    %1065 = vmatpush1.bf16.msra.mxu0 %v1050
    %1066 = vmatprep.subr.bf16.mxu0 0
    %1067 = vmatpush1.bf16.msra.mxu0 0
    %1068 = vmatprep.subr.bf16.mxu0 0
    %1069 = vmatpush1.bf16.msra.mxu0 0
    %1070 = vmatprep.subr.bf16.mxu0 0
    %1071 = vmatpush1.bf16.msra.mxu0 0
    %1072 = vmatprep.subr.bf16.mxu0 0
    %1073 = vmatpush1.bf16.msra.mxu0 0
    %1074 = vmatprep.subr.bf16.mxu0 0
    %1075 = vmatpush1.bf16.msra.mxu0 0
    %1076 = vmatprep.subr.bf16.mxu0 0
    %1077 = vmatpush1.bf16.msra.mxu0 0
    %1078 = vmatprep.subr.bf16.mxu0 0
    %1079 = vmatpush1.bf16.msra.mxu0 0
    %1080 = vmatprep.subr.bf16.mxu0 0
    %1081 = vmatpush1.bf16.msra.mxu0 0
    %1082 = vmatprep.subr.bf16.mxu0 0
    %1083 = vmatpush1.bf16.msra.mxu0 0
    %1084 = vmatprep.subr.bf16.mxu0 0
    %1085 = vmatpush1.bf16.msra.mxu0 0
    %1086 = vmatprep.subr.bf16.mxu0 0
    %1087 = vmatpush1.bf16.msra.mxu0 0
    %1088 = vmatprep.subr.bf16.mxu0 0
    %1089 = vmatpush1.bf16.msra.mxu0 0
    %1090 = vmatprep.mubr.bf16.mxu0 0
    %1091 = vmatmul.mubr.bf16.gmra.mrb[0].mxu0 %v1056
    %v1092 = vpop.f32.mrb[0].mxu0
    %v1093 = vadd.f32 %v1025, %v1092
    %v1094 = vpop.f32.mrb[0].mxu0
    %v1095 = vpop.f32.mrb[0].mxu0
    %v1096 = vadd.f32 %v1028, %v1095
    %v1097 = vpop.f32.mrb[0].mxu0
    %1098 = vdwg.mxu0
    %s1099 = scalar_lea.vmem %s7, 64
    %v1100 = vld [vmem:[%s1099] sm:$0xf]
    %v1101 = vld [vmem:[%s1099 + $0x4] sm:$0xf]
    %v1102 = vld [vmem:[%s1099 + $0x8] sm:$0xf]
    %v1103 = vld [vmem:[%s1099 + $0xc] sm:$0xf]
    %v1104 = vld [vmem:[%s1099 + $0x10] sm:$0xf]
    %v1105 = vld [vmem:[%s1099 + $0x14] sm:$0xf]
    %v1106 = vld [vmem:[%s1099 + $0x18] sm:$0xf]
    %v1107 = vld [vmem:[%s1099 + $0x1c] sm:$0xf]
    %v1108 = vpack.c.bf16 %v941, %v938
    %v1117 = vunpack.c.l.b16 %v1100
    %v1118 = vunpack.c.l.b16 %v1101
    %v1119 = vunpack.c.l.b16 %v1102
    %v1120 = vunpack.c.l.b16 %v1103
    %v1121 = vunpack.c.l.b16 %v1104
    %v1122 = vunpack.c.l.b16 %v1105
    %v1123 = vunpack.c.l.b16 %v1106
    %v1124 = vunpack.c.l.b16 %v1107
    %v1125 = vpack.c.b16 %v1118, %v1117
    %v1126 = vpack.c.b16 %v1120, %v1119
    %v1127 = vpack.c.b16 %v1122, %v1121
    %v1128 = vpack.c.b16 %v1124, %v1123
    %v1134 = vsel %vm986, %v1108, 0
    %1136 = vmatprep.subr.bf16.mxu0 0
    %1137 = vmatpush1.bf16.msra.mxu0 %v1125
    %1138 = vmatprep.subr.bf16.mxu0 0
    %1139 = vmatpush1.bf16.msra.mxu0 %v1126
    %1140 = vmatprep.subr.bf16.mxu0 0
    %1141 = vmatpush1.bf16.msra.mxu0 %v1127
    %1142 = vmatprep.subr.bf16.mxu0 0
    %1143 = vmatpush1.bf16.msra.mxu0 %v1128
    %1144 = vmatprep.subr.bf16.mxu0 0
    %1145 = vmatpush1.bf16.msra.mxu0 0
    %1146 = vmatprep.subr.bf16.mxu0 0
    %1147 = vmatpush1.bf16.msra.mxu0 0
    %1148 = vmatprep.subr.bf16.mxu0 0
    %1149 = vmatpush1.bf16.msra.mxu0 0
    %1150 = vmatprep.subr.bf16.mxu0 0
    %1151 = vmatpush1.bf16.msra.mxu0 0
    %1152 = vmatprep.subr.bf16.mxu0 0
    %1153 = vmatpush1.bf16.msra.mxu0 0
    %1154 = vmatprep.subr.bf16.mxu0 0
    %1155 = vmatpush1.bf16.msra.mxu0 0
    %1156 = vmatprep.subr.bf16.mxu0 0
    %1157 = vmatpush1.bf16.msra.mxu0 0
    %1158 = vmatprep.subr.bf16.mxu0 0
    %1159 = vmatpush1.bf16.msra.mxu0 0
    %1160 = vmatprep.subr.bf16.mxu0 0
    %1161 = vmatpush1.bf16.msra.mxu0 0
    %1162 = vmatprep.subr.bf16.mxu0 0
    %1163 = vmatpush1.bf16.msra.mxu0 0
    %1164 = vmatprep.subr.bf16.mxu0 0
    %1165 = vmatpush1.bf16.msra.mxu0 0
    %1166 = vmatprep.subr.bf16.mxu0 0
    %1167 = vmatpush1.bf16.msra.mxu0 0
    %1168 = vmatprep.mubr.bf16.mxu0 0
    %1169 = vmatmul.mubr.bf16.gmra.mrb[0].mxu0 %v1134
    %v1170 = vpop.f32.mrb[0].mxu0
    %v1171 = vadd.f32 0.0, %v1170
    %v1172 = vpop.f32.mrb[0].mxu0
    %v1173 = vpop.f32.mrb[0].mxu0
    %v1174 = vadd.f32 0.0, %v1173
    %v1175 = vpop.f32.mrb[0].mxu0
    %1176 = vdwg.mxu0
    %v1177 = vadd.f32 %v1093, %v1171
    %v1178 = vadd.f32 %v1096, %v1174
    %v1179 = vld [vmem:[%s11] sm:$0x1]
    %v1181 = vlaneseq
    %v1182 = vshrl.u32 %v1181, 7
    %v1183 = vsub.s32 0, %v1182
    %v1184 = vrot.slane %v1179, %v1183
    %v1186 = vadd.f32 %v1177, %v1184
    %v1187 = vadd.f32 %v1178, %v1184
    %v1188 = vmax.f32 %v1186, 0.0
    %v1189 = vmax.f32 %v1187, 0.0
    %v1190 = vld [vmem:[%s9] sm:$0xf]
    %v1191 = vld [vmem:[%s9 + $0x4] sm:$0xf]
    %v1192 = vld [vmem:[%s9 + $0x8] sm:$0xf]
    %v1193 = vld [vmem:[%s9 + $0xc] sm:$0xf]
    %v1194 = vld [vmem:[%s9 + $0x10] sm:$0xf]
    %v1195 = vld [vmem:[%s9 + $0x14] sm:$0xf]
    %v1196 = vld [vmem:[%s9 + $0x18] sm:$0xf]
    %v1197 = vld [vmem:[%s9 + $0x1c] sm:$0xf]
    %v1198 = vld [vmem:[%s9 + $0x20] sm:$0xf]
    %v1199 = vld [vmem:[%s9 + $0x24] sm:$0xf]
    %v1200 = vld [vmem:[%s9 + $0x28] sm:$0xf]
    %v1201 = vld [vmem:[%s9 + $0x2c] sm:$0xf]
    %v1202 = vld [vmem:[%s9 + $0x30] sm:$0xf]
    %v1203 = vld [vmem:[%s9 + $0x34] sm:$0xf]
    %v1204 = vld [vmem:[%s9 + $0x38] sm:$0xf]
    %v1205 = vld [vmem:[%s9 + $0x3c] sm:$0xf]
    %v1206 = vpack.c.bf16 %v1189, %v1188
    %v1223 = vunpack.c.l.b16 %v1190
    %v1224 = vunpack.c.l.b16 %v1191
    %v1225 = vunpack.c.l.b16 %v1192
    %v1226 = vunpack.c.l.b16 %v1193
    %v1227 = vunpack.c.l.b16 %v1194
    %v1228 = vunpack.c.l.b16 %v1195
    %v1229 = vunpack.c.l.b16 %v1196
    %v1230 = vunpack.c.l.b16 %v1197
    %v1231 = vunpack.c.l.b16 %v1198
    %v1232 = vunpack.c.l.b16 %v1199
    %v1233 = vunpack.c.l.b16 %v1200
    %v1234 = vunpack.c.l.b16 %v1201
    %v1235 = vunpack.c.l.b16 %v1202
    %v1236 = vunpack.c.l.b16 %v1203
    %v1237 = vunpack.c.l.b16 %v1204
    %v1238 = vunpack.c.l.b16 %v1205
    %v1239 = vpack.c.b16 %v1224, %v1223
    %v1240 = vpack.c.b16 %v1226, %v1225
    %v1241 = vpack.c.b16 %v1228, %v1227
    %v1242 = vpack.c.b16 %v1230, %v1229
    %v1243 = vpack.c.b16 %v1232, %v1231
    %v1244 = vpack.c.b16 %v1234, %v1233
    %v1245 = vpack.c.b16 %v1236, %v1235
    %v1246 = vpack.c.b16 %v1238, %v1237
    %1255 = vmatprep.subr.bf16.mxu0 0
    %1256 = vmatpush1.bf16.msra.mxu0 %v1239
    %1257 = vmatprep.subr.bf16.mxu0 0
    %1258 = vmatpush1.bf16.msra.mxu0 %v1240
    %1259 = vmatprep.subr.bf16.mxu0 0
    %1260 = vmatpush1.bf16.msra.mxu0 %v1241
    %1261 = vmatprep.subr.bf16.mxu0 0
    %1262 = vmatpush1.bf16.msra.mxu0 %v1242
    %1263 = vmatprep.subr.bf16.mxu0 0
    %1264 = vmatpush1.bf16.msra.mxu0 %v1243
    %1265 = vmatprep.subr.bf16.mxu0 0
    %1266 = vmatpush1.bf16.msra.mxu0 %v1244
    %1267 = vmatprep.subr.bf16.mxu0 0
    %1268 = vmatpush1.bf16.msra.mxu0 %v1245
    %1269 = vmatprep.subr.bf16.mxu0 0
    %1270 = vmatpush1.bf16.msra.mxu0 %v1246
    %1271 = vmatprep.subr.bf16.mxu0 0
    %1272 = vmatpush1.bf16.msra.mxu0 0
    %1273 = vmatprep.subr.bf16.mxu0 0
    %1274 = vmatpush1.bf16.msra.mxu0 0
    %1275 = vmatprep.subr.bf16.mxu0 0
    %1276 = vmatpush1.bf16.msra.mxu0 0
    %1277 = vmatprep.subr.bf16.mxu0 0
    %1278 = vmatpush1.bf16.msra.mxu0 0
    %1279 = vmatprep.subr.bf16.mxu0 0
    %1280 = vmatpush1.bf16.msra.mxu0 0
    %1281 = vmatprep.subr.bf16.mxu0 0
    %1282 = vmatpush1.bf16.msra.mxu0 0
    %1283 = vmatprep.subr.bf16.mxu0 0
    %1284 = vmatpush1.bf16.msra.mxu0 0
    %1285 = vmatprep.subr.bf16.mxu0 0
    %1286 = vmatpush1.bf16.msra.mxu0 0
    %1287 = vmatprep.mubr.bf16.mxu0 0
    %1288 = vmatmul.mubr.bf16.gmra.mrb[0].mxu0 %v1206
    %v1289 = vpop.f32.mrb[0].mxu0
    %v1290 = vadd.f32 0.0, %v1289
    %v1291 = vpop.f32.mrb[0].mxu0
    %v1292 = vpop.f32.mrb[0].mxu0
    %v1293 = vadd.f32 0.0, %v1292
    %v1294 = vpop.f32.mrb[0].mxu0
    %1295 = vdwg.mxu0
    %s1296 = scalar_lea.vmem %s9, 64
    %v1297 = vld [vmem:[%s1296] sm:$0xf]
    %v1298 = vld [vmem:[%s1296 + $0x4] sm:$0xf]
    %v1299 = vld [vmem:[%s1296 + $0x8] sm:$0xf]
    %v1300 = vld [vmem:[%s1296 + $0xc] sm:$0xf]
    %v1301 = vld [vmem:[%s1296 + $0x10] sm:$0xf]
    %v1302 = vld [vmem:[%s1296 + $0x14] sm:$0xf]
    %v1303 = vld [vmem:[%s1296 + $0x18] sm:$0xf]
    %v1304 = vld [vmem:[%s1296 + $0x1c] sm:$0xf]
    %v1305 = vld [vmem:[%s1296 + $0x20] sm:$0xf]
    %v1306 = vld [vmem:[%s1296 + $0x24] sm:$0xf]
    %v1307 = vld [vmem:[%s1296 + $0x28] sm:$0xf]
    %v1308 = vld [vmem:[%s1296 + $0x2c] sm:$0xf]
    %v1309 = vld [vmem:[%s1296 + $0x30] sm:$0xf]
    %v1310 = vld [vmem:[%s1296 + $0x34] sm:$0xf]
    %v1311 = vld [vmem:[%s1296 + $0x38] sm:$0xf]
    %v1312 = vld [vmem:[%s1296 + $0x3c] sm:$0xf]
    %v1329 = vunpack.c.l.b16 %v1297
    %v1330 = vunpack.c.l.b16 %v1298
    %v1331 = vunpack.c.l.b16 %v1299
    %v1332 = vunpack.c.l.b16 %v1300
    %v1333 = vunpack.c.l.b16 %v1301
    %v1334 = vunpack.c.l.b16 %v1302
    %v1335 = vunpack.c.l.b16 %v1303
    %v1336 = vunpack.c.l.b16 %v1304
    %v1337 = vunpack.c.l.b16 %v1305
    %v1338 = vunpack.c.l.b16 %v1306
    %v1339 = vunpack.c.l.b16 %v1307
    %v1340 = vunpack.c.l.b16 %v1308
    %v1341 = vunpack.c.l.b16 %v1309
    %v1342 = vunpack.c.l.b16 %v1310
    %v1343 = vunpack.c.l.b16 %v1311
    %v1344 = vunpack.c.l.b16 %v1312
    %v1345 = vpack.c.b16 %v1330, %v1329
    %v1346 = vpack.c.b16 %v1332, %v1331
    %v1347 = vpack.c.b16 %v1334, %v1333
    %v1348 = vpack.c.b16 %v1336, %v1335
    %v1349 = vpack.c.b16 %v1338, %v1337
    %v1350 = vpack.c.b16 %v1340, %v1339
    %v1351 = vpack.c.b16 %v1342, %v1341
    %v1352 = vpack.c.b16 %v1344, %v1343
    %1361 = vmatprep.subr.bf16.mxu0 0
    %1362 = vmatpush1.bf16.msra.mxu0 %v1345
    %1363 = vmatprep.subr.bf16.mxu0 0
    %1364 = vmatpush1.bf16.msra.mxu0 %v1346
    %1365 = vmatprep.subr.bf16.mxu0 0
    %1366 = vmatpush1.bf16.msra.mxu0 %v1347
    %1367 = vmatprep.subr.bf16.mxu0 0
    %1368 = vmatpush1.bf16.msra.mxu0 %v1348
    %1369 = vmatprep.subr.bf16.mxu0 0
    %1370 = vmatpush1.bf16.msra.mxu0 %v1349
    %1371 = vmatprep.subr.bf16.mxu0 0
    %1372 = vmatpush1.bf16.msra.mxu0 %v1350
    %1373 = vmatprep.subr.bf16.mxu0 0
    %1374 = vmatpush1.bf16.msra.mxu0 %v1351
    %1375 = vmatprep.subr.bf16.mxu0 0
    %1376 = vmatpush1.bf16.msra.mxu0 %v1352
    %1377 = vmatprep.subr.bf16.mxu0 0
    %1378 = vmatpush1.bf16.msra.mxu0 0
    %1379 = vmatprep.subr.bf16.mxu0 0
    %1380 = vmatpush1.bf16.msra.mxu0 0
    %1381 = vmatprep.subr.bf16.mxu0 0
    %1382 = vmatpush1.bf16.msra.mxu0 0
    %1383 = vmatprep.subr.bf16.mxu0 0
    %1384 = vmatpush1.bf16.msra.mxu0 0
    %1385 = vmatprep.subr.bf16.mxu0 0
    %1386 = vmatpush1.bf16.msra.mxu0 0
    %1387 = vmatprep.subr.bf16.mxu0 0
    %1388 = vmatpush1.bf16.msra.mxu0 0
    %1389 = vmatprep.subr.bf16.mxu0 0
    %1390 = vmatpush1.bf16.msra.mxu0 0
    %1391 = vmatprep.subr.bf16.mxu0 0
    %1392 = vmatpush1.bf16.msra.mxu0 0
    %1393 = vmatprep.mubr.bf16.mxu0 0
    %1394 = vmatmul.mubr.bf16.gmra.mrb[0].mxu0 %v1206
    %v1395 = vpop.f32.mrb[0].mxu0
    %v1396 = vadd.f32 0.0, %v1395
    %v1397 = vpop.f32.mrb[0].mxu0
    %v1398 = vpop.f32.mrb[0].mxu0
    %v1399 = vadd.f32 0.0, %v1398
    %v1400 = vpop.f32.mrb[0].mxu0
    %1401 = vdwg.mxu0
    %v1402 = vmax.f32 %v1290, %v1396
    %v1403 = vmax.f32 %v1293, %v1399
    %v1404 = vld [vmem:[%s10] sm:$0xf]
    %v1405 = vpack.c.bf16 %v1403, %v1402
    %v1407 = vsel %vm847, %v1404, 0
    %1409 = vmatprep.subr.bf16.mxu0 0
    %1410 = vmatpush1.bf16.msra.mxu0 %v1405
    %1411 = vmatprep.subr.bf16.mxu0 0
    %1412 = vmatpush1.bf16.msra.mxu0 0
    %1413 = vmatprep.subr.bf16.mxu0 0
    %1414 = vmatpush1.bf16.msra.mxu0 0
    %1415 = vmatprep.subr.bf16.mxu0 0
    %1416 = vmatpush1.bf16.msra.mxu0 0
    %1417 = vmatprep.subr.bf16.mxu0 0
    %1418 = vmatpush1.bf16.msra.mxu0 0
    %1419 = vmatprep.subr.bf16.mxu0 0
    %1420 = vmatpush1.bf16.msra.mxu0 0
    %1421 = vmatprep.subr.bf16.mxu0 0
    %1422 = vmatpush1.bf16.msra.mxu0 0
    %1423 = vmatprep.subr.bf16.mxu0 0
    %1424 = vmatpush1.bf16.msra.mxu0 0
    %1425 = vmatprep.subr.bf16.mxu0 0
    %1426 = vmatpush1.bf16.msra.mxu0 0
    %1427 = vmatprep.subr.bf16.mxu0 0
    %1428 = vmatpush1.bf16.msra.mxu0 0
    %1429 = vmatprep.subr.bf16.mxu0 0
    %1430 = vmatpush1.bf16.msra.mxu0 0
    %1431 = vmatprep.subr.bf16.mxu0 0
    %1432 = vmatpush1.bf16.msra.mxu0 0
    %1433 = vmatprep.subr.bf16.mxu0 0
    %1434 = vmatpush1.bf16.msra.mxu0 0
    %1435 = vmatprep.subr.bf16.mxu0 0
    %1436 = vmatpush1.bf16.msra.mxu0 0
    %1437 = vmatprep.subr.bf16.mxu0 0
    %1438 = vmatpush1.bf16.msra.mxu0 0
    %1439 = vmatprep.subr.bf16.mxu0 0
    %1440 = vmatpush1.bf16.msra.mxu0 0
    %1441 = vmatprep.mubr.bf16.mxu0 0
    %1442 = vmatmul.mubr.bf16.gmra.mrb[0].mxu0 %v1407
    %v1443 = vpop.f32.mrb[0].mxu0
    %v1444 = vadd.f32 0.0, %v1443
    %v1445 = vpop.f32.mrb[0].mxu0
    %v1446 = vpop.f32.mrb[0].mxu0
    %v1447 = vpop.f32.mrb[0].mxu0
    %1448 = vdwg.mxu0
    %s1449 = scalar_lea.vmem %s10, 4
    %v1450 = vld [vmem:[%s1449] sm:$0xf]
    %v1452 = vsel %vm847, %v1450, 0
    %1454 = vmatprep.subr.bf16.mxu0 0
    %1455 = vmatpush1.bf16.msra.mxu0 %v1405
    %1456 = vmatprep.subr.bf16.mxu0 0
    %1457 = vmatpush1.bf16.msra.mxu0 0
    %1458 = vmatprep.subr.bf16.mxu0 0
    %1459 = vmatpush1.bf16.msra.mxu0 0
    %1460 = vmatprep.subr.bf16.mxu0 0
    %1461 = vmatpush1.bf16.msra.mxu0 0
    %1462 = vmatprep.subr.bf16.mxu0 0
    %1463 = vmatpush1.bf16.msra.mxu0 0
    %1464 = vmatprep.subr.bf16.mxu0 0
    %1465 = vmatpush1.bf16.msra.mxu0 0
    %1466 = vmatprep.subr.bf16.mxu0 0
    %1467 = vmatpush1.bf16.msra.mxu0 0
    %1468 = vmatprep.subr.bf16.mxu0 0
    %1469 = vmatpush1.bf16.msra.mxu0 0
    %1470 = vmatprep.subr.bf16.mxu0 0
    %1471 = vmatpush1.bf16.msra.mxu0 0
    %1472 = vmatprep.subr.bf16.mxu0 0
    %1473 = vmatpush1.bf16.msra.mxu0 0
    %1474 = vmatprep.subr.bf16.mxu0 0
    %1475 = vmatpush1.bf16.msra.mxu0 0
    %1476 = vmatprep.subr.bf16.mxu0 0
    %1477 = vmatpush1.bf16.msra.mxu0 0
    %1478 = vmatprep.subr.bf16.mxu0 0
    %1479 = vmatpush1.bf16.msra.mxu0 0
    %1480 = vmatprep.subr.bf16.mxu0 0
    %1481 = vmatpush1.bf16.msra.mxu0 0
    %1482 = vmatprep.subr.bf16.mxu0 0
    %1483 = vmatpush1.bf16.msra.mxu0 0
    %1484 = vmatprep.subr.bf16.mxu0 0
    %1485 = vmatpush1.bf16.msra.mxu0 0
    %1486 = vmatprep.mubr.bf16.mxu0 0
    %1487 = vmatmul.mubr.bf16.gmra.mrb[0].mxu0 %v1452
    %v1488 = vpop.f32.mrb[0].mxu0
    %v1489 = vadd.f32 0.0, %v1488
    %v1490 = vpop.f32.mrb[0].mxu0
    %v1491 = vpop.f32.mrb[0].mxu0
    %v1492 = vpop.f32.mrb[0].mxu0
    %1493 = vdwg.mxu0
    %v1494 = vmax.f32 %v1444, %v1489
    %v1495 = vld [vmem:[%s13] sm:$0xf]
    %v1496 = vpack.c.bf16 %v1494, %v1494
    %vm1497 = vcmask 64512
    %v1499 = vsel %vm1497, %v1495, 0
    %vm1501 = vcmask 1043456
    %v1503 = vsel %vm1501, %v1496, 0
    %1505 = vmatprep.subr.bf16.mxu0 0
    %1506 = vmatpush1.bf16.msra.mxu0 %v1503
    %1507 = vmatprep.subr.bf16.mxu0 0
    %1508 = vmatpush1.bf16.msra.mxu0 0
    %1509 = vmatprep.subr.bf16.mxu0 0
    %1510 = vmatpush1.bf16.msra.mxu0 0
    %1511 = vmatprep.subr.bf16.mxu0 0
    %1512 = vmatpush1.bf16.msra.mxu0 0
    %1513 = vmatprep.subr.bf16.mxu0 0
    %1514 = vmatpush1.bf16.msra.mxu0 0
    %1515 = vmatprep.subr.bf16.mxu0 0
    %1516 = vmatpush1.bf16.msra.mxu0 0
    %1517 = vmatprep.subr.bf16.mxu0 0
    %1518 = vmatpush1.bf16.msra.mxu0 0
    %1519 = vmatprep.subr.bf16.mxu0 0
    %1520 = vmatpush1.bf16.msra.mxu0 0
    %1521 = vmatprep.subr.bf16.mxu0 0
    %1522 = vmatpush1.bf16.msra.mxu0 0
    %1523 = vmatprep.subr.bf16.mxu0 0
    %1524 = vmatpush1.bf16.msra.mxu0 0
    %1525 = vmatprep.subr.bf16.mxu0 0
    %1526 = vmatpush1.bf16.msra.mxu0 0
    %1527 = vmatprep.subr.bf16.mxu0 0
    %1528 = vmatpush1.bf16.msra.mxu0 0
    %1529 = vmatprep.subr.bf16.mxu0 0
    %1530 = vmatpush1.bf16.msra.mxu0 0
    %1531 = vmatprep.subr.bf16.mxu0 0
    %1532 = vmatpush1.bf16.msra.mxu0 0
    %1533 = vmatprep.subr.bf16.mxu0 0
    %1534 = vmatpush1.bf16.msra.mxu0 0
    %1535 = vmatprep.subr.bf16.mxu0 0
    %1536 = vmatpush1.bf16.msra.mxu0 0
    %1537 = vmatprep.mubr.bf16.mxu0 0
    %1538 = vmatmul.mubr.bf16.gmra.mrb[0].mxu0 %v1499
    %v1539 = vpop.f32.mrb[0].mxu0
    %v1540 = vadd.f32 0.0, %v1539
    %v1541 = vpop.f32.mrb[0].mxu0
    %v1542 = vpop.f32.mrb[0].mxu0
    %v1543 = vpop.f32.mrb[0].mxu0
    %1544 = vdwg.mxu0
    %s1545 = scalar_lea.vmem %s13, 4
    %v1546 = vld [vmem:[%s1545] sm:$0xf]
    %v1548 = vsel %vm1497, %v1546, 0
    %1550 = vmatprep.subr.bf16.mxu0 0
    %1551 = vmatpush1.bf16.msra.mxu0 %v1503
    %1552 = vmatprep.subr.bf16.mxu0 0
    %1553 = vmatpush1.bf16.msra.mxu0 0
    %1554 = vmatprep.subr.bf16.mxu0 0
    %1555 = vmatpush1.bf16.msra.mxu0 0
    %1556 = vmatprep.subr.bf16.mxu0 0
    %1557 = vmatpush1.bf16.msra.mxu0 0
    %1558 = vmatprep.subr.bf16.mxu0 0
    %1559 = vmatpush1.bf16.msra.mxu0 0
    %1560 = vmatprep.subr.bf16.mxu0 0
    %1561 = vmatpush1.bf16.msra.mxu0 0
    %1562 = vmatprep.subr.bf16.mxu0 0
    %1563 = vmatpush1.bf16.msra.mxu0 0
    %1564 = vmatprep.subr.bf16.mxu0 0
    %1565 = vmatpush1.bf16.msra.mxu0 0
    %1566 = vmatprep.subr.bf16.mxu0 0
    %1567 = vmatpush1.bf16.msra.mxu0 0
    %1568 = vmatprep.subr.bf16.mxu0 0
    %1569 = vmatpush1.bf16.msra.mxu0 0
    %1570 = vmatprep.subr.bf16.mxu0 0
    %1571 = vmatpush1.bf16.msra.mxu0 0
    %1572 = vmatprep.subr.bf16.mxu0 0
    %1573 = vmatpush1.bf16.msra.mxu0 0
    %1574 = vmatprep.subr.bf16.mxu0 0
    %1575 = vmatpush1.bf16.msra.mxu0 0
    %1576 = vmatprep.subr.bf16.mxu0 0
    %1577 = vmatpush1.bf16.msra.mxu0 0
    %1578 = vmatprep.subr.bf16.mxu0 0
    %1579 = vmatpush1.bf16.msra.mxu0 0
    %1580 = vmatprep.subr.bf16.mxu0 0
    %1581 = vmatpush1.bf16.msra.mxu0 0
    %1582 = vmatprep.mubr.bf16.mxu0 0
    %1583 = vmatmul.mubr.bf16.gmra.mrb[0].mxu0 %v1548
    %v1584 = vpop.f32.mrb[0].mxu0
    %v1585 = vadd.f32 0.0, %v1584
    %v1586 = vpop.f32.mrb[0].mxu0
    %v1587 = vpop.f32.mrb[0].mxu0
    %v1588 = vpop.f32.mrb[0].mxu0
    %1589 = vdwg.mxu0
    %v1590 = vld [vmem:[%s12] sm:$0xf]
    %v1591 = vld [vmem:[%s12 + $0x4] sm:$0xf]
    %v1592 = vld [vmem:[%s12 + $0x8] sm:$0xf]
    %v1593 = vld [vmem:[%s12 + $0xc] sm:$0xf]
    %v1594 = vld [vmem:[%s12 + $0x10] sm:$0xf]
    %v1595 = vld [vmem:[%s12 + $0x14] sm:$0xf]
    %v1596 = vld [vmem:[%s12 + $0x18] sm:$0xf]
    %v1597 = vld [vmem:[%s12 + $0x1c] sm:$0xf]
    %v1598 = vpack.c.bf16 %v1540, %v1540
    %s1599 = scalar_lea.vmem %s12, 32
    %v1600 = vld [vmem:[%s1599] sm:$0xf]
    %v1601 = vld [vmem:[%s1599 + $0x4] sm:$0xf]
    %v1602 = vld [vmem:[%s1599 + $0x8] sm:$0xf]
    %v1603 = vld [vmem:[%s1599 + $0xc] sm:$0xf]
    %v1604 = vld [vmem:[%s1599 + $0x10] sm:$0xf]
    %v1605 = vld [vmem:[%s1599 + $0x14] sm:$0xf]
    %v1606 = vld [vmem:[%s1599 + $0x18] sm:$0xf]
    %v1607 = vld [vmem:[%s1599 + $0x1c] sm:$0xf]
    %v1616 = vunpack.c.l.b16 %v1600
    %v1617 = vunpack.c.l.b16 %v1601
    %v1618 = vunpack.c.l.b16 %v1602
    %v1619 = vunpack.c.l.b16 %v1603
    %v1620 = vunpack.c.l.b16 %v1604
    %v1621 = vunpack.c.l.b16 %v1605
    %v1622 = vunpack.c.l.b16 %v1606
    %v1623 = vunpack.c.l.b16 %v1607
    %v1624 = vpack.c.b16 %v1617, %v1616
    %v1625 = vpack.c.b16 %v1619, %v1618
    %v1626 = vpack.c.b16 %v1621, %v1620
    %v1627 = vpack.c.b16 %v1623, %v1622
    %v1632 = vsel %vm986, %v1496, 0
    %1634 = vmatprep.subr.bf16.mxu0 0
    %1635 = vmatpush1.bf16.msra.mxu0 %v1624
    %1636 = vmatprep.subr.bf16.mxu0 0
    %1637 = vmatpush1.bf16.msra.mxu0 %v1625
    %1638 = vmatprep.subr.bf16.mxu0 0
    %1639 = vmatpush1.bf16.msra.mxu0 %v1626
    %1640 = vmatprep.subr.bf16.mxu0 0
    %1641 = vmatpush1.bf16.msra.mxu0 %v1627
    %1642 = vmatprep.subr.bf16.mxu0 0
    %1643 = vmatpush1.bf16.msra.mxu0 0
    %1644 = vmatprep.subr.bf16.mxu0 0
    %1645 = vmatpush1.bf16.msra.mxu0 0
    %1646 = vmatprep.subr.bf16.mxu0 0
    %1647 = vmatpush1.bf16.msra.mxu0 0
    %1648 = vmatprep.subr.bf16.mxu0 0
    %1649 = vmatpush1.bf16.msra.mxu0 0
    %1650 = vmatprep.subr.bf16.mxu0 0
    %1651 = vmatpush1.bf16.msra.mxu0 0
    %1652 = vmatprep.subr.bf16.mxu0 0
    %1653 = vmatpush1.bf16.msra.mxu0 0
    %1654 = vmatprep.subr.bf16.mxu0 0
    %1655 = vmatpush1.bf16.msra.mxu0 0
    %1656 = vmatprep.subr.bf16.mxu0 0
    %1657 = vmatpush1.bf16.msra.mxu0 0
    %1658 = vmatprep.subr.bf16.mxu0 0
    %1659 = vmatpush1.bf16.msra.mxu0 0
    %1660 = vmatprep.subr.bf16.mxu0 0
    %1661 = vmatpush1.bf16.msra.mxu0 0
    %1662 = vmatprep.subr.bf16.mxu0 0
    %1663 = vmatpush1.bf16.msra.mxu0 0
    %1664 = vmatprep.subr.bf16.mxu0 0
    %1665 = vmatpush1.bf16.msra.mxu0 0
    %1666 = vmatprep.mubr.bf16.mxu0 0
    %1667 = vmatmul.mubr.bf16.gmra.mrb[0].mxu0 %v1632
    %v1668 = vpop.f32.mrb[0].mxu0
    %v1669 = vadd.f32 0.0, %v1668
    %v1670 = vpop.f32.mrb[0].mxu0
    %v1671 = vpop.f32.mrb[0].mxu0
    %v1672 = vpop.f32.mrb[0].mxu0
    %1673 = vdwg.mxu0
    %v1682 = vunpack.c.l.b16 %v1590
    %v1683 = vunpack.c.l.b16 %v1591
    %v1684 = vunpack.c.l.b16 %v1592
    %v1685 = vunpack.c.l.b16 %v1593
    %v1686 = vunpack.c.l.b16 %v1594
    %v1687 = vunpack.c.l.b16 %v1595
    %v1688 = vunpack.c.l.b16 %v1596
    %v1689 = vunpack.c.l.b16 %v1597
    %v1690 = vpack.c.b16 %v1683, %v1682
    %v1691 = vpack.c.b16 %v1685, %v1684
    %v1692 = vpack.c.b16 %v1687, %v1686
    %v1693 = vpack.c.b16 %v1689, %v1688
    %v1699 = vsel %vm986, %v1598, 0
    %1701 = vmatprep.subr.bf16.mxu0 0
    %1702 = vmatpush1.bf16.msra.mxu0 %v1690
    %1703 = vmatprep.subr.bf16.mxu0 0
    %1704 = vmatpush1.bf16.msra.mxu0 %v1691
    %1705 = vmatprep.subr.bf16.mxu0 0
    %1706 = vmatpush1.bf16.msra.mxu0 %v1692
    %1707 = vmatprep.subr.bf16.mxu0 0
    %1708 = vmatpush1.bf16.msra.mxu0 %v1693
    %1709 = vmatprep.subr.bf16.mxu0 0
    %1710 = vmatpush1.bf16.msra.mxu0 0
    %1711 = vmatprep.subr.bf16.mxu0 0
    %1712 = vmatpush1.bf16.msra.mxu0 0
    %1713 = vmatprep.subr.bf16.mxu0 0
    %1714 = vmatpush1.bf16.msra.mxu0 0
    %1715 = vmatprep.subr.bf16.mxu0 0
    %1716 = vmatpush1.bf16.msra.mxu0 0
    %1717 = vmatprep.subr.bf16.mxu0 0
    %1718 = vmatpush1.bf16.msra.mxu0 0
    %1719 = vmatprep.subr.bf16.mxu0 0
    %1720 = vmatpush1.bf16.msra.mxu0 0
    %1721 = vmatprep.subr.bf16.mxu0 0
    %1722 = vmatpush1.bf16.msra.mxu0 0
    %1723 = vmatprep.subr.bf16.mxu0 0
    %1724 = vmatpush1.bf16.msra.mxu0 0
    %1725 = vmatprep.subr.bf16.mxu0 0
    %1726 = vmatpush1.bf16.msra.mxu0 0
    %1727 = vmatprep.subr.bf16.mxu0 0
    %1728 = vmatpush1.bf16.msra.mxu0 0
    %1729 = vmatprep.subr.bf16.mxu0 0
    %1730 = vmatpush1.bf16.msra.mxu0 0
    %1731 = vmatprep.subr.bf16.mxu0 0
    %1732 = vmatpush1.bf16.msra.mxu0 0
    %1733 = vmatprep.mubr.bf16.mxu0 0
    %1734 = vmatmul.mubr.bf16.gmra.mrb[0].mxu0 %v1699
    %v1735 = vpop.f32.mrb[0].mxu0
    %v1736 = vadd.f32 %v1669, %v1735
    %v1737 = vpop.f32.mrb[0].mxu0
    %v1738 = vpop.f32.mrb[0].mxu0
    %v1739 = vpop.f32.mrb[0].mxu0
    %1740 = vdwg.mxu0
    %s1741 = scalar_lea.vmem %s12, 64
    %v1742 = vld [vmem:[%s1741] sm:$0xf]
    %v1743 = vld [vmem:[%s1741 + $0x4] sm:$0xf]
    %v1744 = vld [vmem:[%s1741 + $0x8] sm:$0xf]
    %v1745 = vld [vmem:[%s1741 + $0xc] sm:$0xf]
    %v1746 = vld [vmem:[%s1741 + $0x10] sm:$0xf]
    %v1747 = vld [vmem:[%s1741 + $0x14] sm:$0xf]
    %v1748 = vld [vmem:[%s1741 + $0x18] sm:$0xf]
    %v1749 = vld [vmem:[%s1741 + $0x1c] sm:$0xf]
    %v1750 = vpack.c.bf16 %v1585, %v1585
    %v1759 = vunpack.c.l.b16 %v1742
    %v1760 = vunpack.c.l.b16 %v1743
    %v1761 = vunpack.c.l.b16 %v1744
    %v1762 = vunpack.c.l.b16 %v1745
    %v1763 = vunpack.c.l.b16 %v1746
    %v1764 = vunpack.c.l.b16 %v1747
    %v1765 = vunpack.c.l.b16 %v1748
    %v1766 = vunpack.c.l.b16 %v1749
    %v1767 = vpack.c.b16 %v1760, %v1759
    %v1768 = vpack.c.b16 %v1762, %v1761
    %v1769 = vpack.c.b16 %v1764, %v1763
    %v1770 = vpack.c.b16 %v1766, %v1765
    %v1776 = vsel %vm986, %v1750, 0
    %1778 = vmatprep.subr.bf16.mxu0 0
    %1779 = vmatpush1.bf16.msra.mxu0 %v1767
    %1780 = vmatprep.subr.bf16.mxu0 0
    %1781 = vmatpush1.bf16.msra.mxu0 %v1768
    %1782 = vmatprep.subr.bf16.mxu0 0
    %1783 = vmatpush1.bf16.msra.mxu0 %v1769
    %1784 = vmatprep.subr.bf16.mxu0 0
    %1785 = vmatpush1.bf16.msra.mxu0 %v1770
    %1786 = vmatprep.subr.bf16.mxu0 0
    %1787 = vmatpush1.bf16.msra.mxu0 0
    %1788 = vmatprep.subr.bf16.mxu0 0
    %1789 = vmatpush1.bf16.msra.mxu0 0
    %1790 = vmatprep.subr.bf16.mxu0 0
    %1791 = vmatpush1.bf16.msra.mxu0 0
    %1792 = vmatprep.subr.bf16.mxu0 0
    %1793 = vmatpush1.bf16.msra.mxu0 0
    %1794 = vmatprep.subr.bf16.mxu0 0
    %1795 = vmatpush1.bf16.msra.mxu0 0
    %1796 = vmatprep.subr.bf16.mxu0 0
    %1797 = vmatpush1.bf16.msra.mxu0 0
    %1798 = vmatprep.subr.bf16.mxu0 0
    %1799 = vmatpush1.bf16.msra.mxu0 0
    %1800 = vmatprep.subr.bf16.mxu0 0
    %1801 = vmatpush1.bf16.msra.mxu0 0
    %1802 = vmatprep.subr.bf16.mxu0 0
    %1803 = vmatpush1.bf16.msra.mxu0 0
    %1804 = vmatprep.subr.bf16.mxu0 0
    %1805 = vmatpush1.bf16.msra.mxu0 0
    %1806 = vmatprep.subr.bf16.mxu0 0
    %1807 = vmatpush1.bf16.msra.mxu0 0
    %1808 = vmatprep.subr.bf16.mxu0 0
    %1809 = vmatpush1.bf16.msra.mxu0 0
    %1810 = vmatprep.mubr.bf16.mxu0 0
    %1811 = vmatmul.mubr.bf16.gmra.mrb[0].mxu0 %v1776
    %v1812 = vpop.f32.mrb[0].mxu0
    %v1813 = vadd.f32 0.0, %v1812
    %v1814 = vpop.f32.mrb[0].mxu0
    %v1815 = vpop.f32.mrb[0].mxu0
    %v1816 = vpop.f32.mrb[0].mxu0
    %1817 = vdwg.mxu0
    %v1818 = vadd.f32 %v1736, %v1813
    %v1819 = vld [vmem:[%s16] sm:$0x1]
    %v1821 = vlaneseq
    %v1822 = vshrl.u32 %v1821, 7
    %v1823 = vsub.s32 0, %v1822
    %v1824 = vrot.slane %v1819, %v1823
    %v1826 = vadd.f32 %v1818, %v1824
    %v1827 = vmax.f32 %v1826, 0.0
    %v1828 = vld [vmem:[%s14] sm:$0xf]
    %v1829 = vld [vmem:[%s14 + $0x4] sm:$0xf]
    %v1830 = vld [vmem:[%s14 + $0x8] sm:$0xf]
    %v1831 = vld [vmem:[%s14 + $0xc] sm:$0xf]
    %v1832 = vld [vmem:[%s14 + $0x10] sm:$0xf]
    %v1833 = vld [vmem:[%s14 + $0x14] sm:$0xf]
    %v1834 = vld [vmem:[%s14 + $0x18] sm:$0xf]
    %v1835 = vld [vmem:[%s14 + $0x1c] sm:$0xf]
    %v1836 = vld [vmem:[%s14 + $0x20] sm:$0xf]
    %v1837 = vld [vmem:[%s14 + $0x24] sm:$0xf]
    %v1838 = vld [vmem:[%s14 + $0x28] sm:$0xf]
    %v1839 = vld [vmem:[%s14 + $0x2c] sm:$0xf]
    %v1840 = vld [vmem:[%s14 + $0x30] sm:$0xf]
    %v1841 = vld [vmem:[%s14 + $0x34] sm:$0xf]
    %v1842 = vld [vmem:[%s14 + $0x38] sm:$0xf]
    %v1843 = vld [vmem:[%s14 + $0x3c] sm:$0xf]
    %v1844 = vpack.c.bf16 %v1827, %v1827
    %v1861 = vunpack.c.l.b16 %v1828
    %v1862 = vunpack.c.l.b16 %v1829
    %v1863 = vunpack.c.l.b16 %v1830
    %v1864 = vunpack.c.l.b16 %v1831
    %v1865 = vunpack.c.l.b16 %v1832
    %v1866 = vunpack.c.l.b16 %v1833
    %v1867 = vunpack.c.l.b16 %v1834
    %v1868 = vunpack.c.l.b16 %v1835
    %v1869 = vunpack.c.l.b16 %v1836
    %v1870 = vunpack.c.l.b16 %v1837
    %v1871 = vunpack.c.l.b16 %v1838
    %v1872 = vunpack.c.l.b16 %v1839
    %v1873 = vunpack.c.l.b16 %v1840
    %v1874 = vunpack.c.l.b16 %v1841
    %v1875 = vunpack.c.l.b16 %v1842
    %v1876 = vunpack.c.l.b16 %v1843
    %v1877 = vpack.c.b16 %v1862, %v1861
    %v1878 = vpack.c.b16 %v1864, %v1863
    %v1879 = vpack.c.b16 %v1866, %v1865
    %v1880 = vpack.c.b16 %v1868, %v1867
    %v1881 = vpack.c.b16 %v1870, %v1869
    %v1882 = vpack.c.b16 %v1872, %v1871
    %v1883 = vpack.c.b16 %v1874, %v1873
    %v1884 = vpack.c.b16 %v1876, %v1875
    %1893 = vmatprep.subr.bf16.mxu0 0
    %1894 = vmatpush1.bf16.msra.mxu0 %v1877
    %1895 = vmatprep.subr.bf16.mxu0 0
    %1896 = vmatpush1.bf16.msra.mxu0 %v1878
    %1897 = vmatprep.subr.bf16.mxu0 0
    %1898 = vmatpush1.bf16.msra.mxu0 %v1879
    %1899 = vmatprep.subr.bf16.mxu0 0
    %1900 = vmatpush1.bf16.msra.mxu0 %v1880
    %1901 = vmatprep.subr.bf16.mxu0 0
    %1902 = vmatpush1.bf16.msra.mxu0 %v1881
    %1903 = vmatprep.subr.bf16.mxu0 0
    %1904 = vmatpush1.bf16.msra.mxu0 %v1882
    %1905 = vmatprep.subr.bf16.mxu0 0
    %1906 = vmatpush1.bf16.msra.mxu0 %v1883
    %1907 = vmatprep.subr.bf16.mxu0 0
    %1908 = vmatpush1.bf16.msra.mxu0 %v1884
    %1909 = vmatprep.subr.bf16.mxu0 0
    %1910 = vmatpush1.bf16.msra.mxu0 0
    %1911 = vmatprep.subr.bf16.mxu0 0
    %1912 = vmatpush1.bf16.msra.mxu0 0
    %1913 = vmatprep.subr.bf16.mxu0 0
    %1914 = vmatpush1.bf16.msra.mxu0 0
    %1915 = vmatprep.subr.bf16.mxu0 0
    %1916 = vmatpush1.bf16.msra.mxu0 0
    %1917 = vmatprep.subr.bf16.mxu0 0
    %1918 = vmatpush1.bf16.msra.mxu0 0
    %1919 = vmatprep.subr.bf16.mxu0 0
    %1920 = vmatpush1.bf16.msra.mxu0 0
    %1921 = vmatprep.subr.bf16.mxu0 0
    %1922 = vmatpush1.bf16.msra.mxu0 0
    %1923 = vmatprep.subr.bf16.mxu0 0
    %1924 = vmatpush1.bf16.msra.mxu0 0
    %1925 = vmatprep.mubr.bf16.mxu0 0
    %1926 = vmatmul.mubr.bf16.gmra.mrb[0].mxu0 %v1844
    %v1927 = vpop.f32.mrb[0].mxu0
    %v1928 = vadd.f32 0.0, %v1927
    %v1929 = vpop.f32.mrb[0].mxu0
    %v1930 = vpop.f32.mrb[0].mxu0
    %v1931 = vpop.f32.mrb[0].mxu0
    %1932 = vdwg.mxu0
    %s1933 = scalar_lea.vmem %s14, 64
    %v1934 = vld [vmem:[%s1933] sm:$0xf]
    %v1935 = vld [vmem:[%s1933 + $0x4] sm:$0xf]
    %v1936 = vld [vmem:[%s1933 + $0x8] sm:$0xf]
    %v1937 = vld [vmem:[%s1933 + $0xc] sm:$0xf]
    %v1938 = vld [vmem:[%s1933 + $0x10] sm:$0xf]
    %v1939 = vld [vmem:[%s1933 + $0x14] sm:$0xf]
    %v1940 = vld [vmem:[%s1933 + $0x18] sm:$0xf]
    %v1941 = vld [vmem:[%s1933 + $0x1c] sm:$0xf]
    %v1942 = vld [vmem:[%s1933 + $0x20] sm:$0xf]
    %v1943 = vld [vmem:[%s1933 + $0x24] sm:$0xf]
    %v1944 = vld [vmem:[%s1933 + $0x28] sm:$0xf]
    %v1945 = vld [vmem:[%s1933 + $0x2c] sm:$0xf]
    %v1946 = vld [vmem:[%s1933 + $0x30] sm:$0xf]
    %v1947 = vld [vmem:[%s1933 + $0x34] sm:$0xf]
    %v1948 = vld [vmem:[%s1933 + $0x38] sm:$0xf]
    %v1949 = vld [vmem:[%s1933 + $0x3c] sm:$0xf]
    %v1966 = vunpack.c.l.b16 %v1934
    %v1967 = vunpack.c.l.b16 %v1935
    %v1968 = vunpack.c.l.b16 %v1936
    %v1969 = vunpack.c.l.b16 %v1937
    %v1970 = vunpack.c.l.b16 %v1938
    %v1971 = vunpack.c.l.b16 %v1939
    %v1972 = vunpack.c.l.b16 %v1940
    %v1973 = vunpack.c.l.b16 %v1941
    %v1974 = vunpack.c.l.b16 %v1942
    %v1975 = vunpack.c.l.b16 %v1943
    %v1976 = vunpack.c.l.b16 %v1944
    %v1977 = vunpack.c.l.b16 %v1945
    %v1978 = vunpack.c.l.b16 %v1946
    %v1979 = vunpack.c.l.b16 %v1947
    %v1980 = vunpack.c.l.b16 %v1948
    %v1981 = vunpack.c.l.b16 %v1949
    %v1982 = vpack.c.b16 %v1967, %v1966
    %v1983 = vpack.c.b16 %v1969, %v1968
    %v1984 = vpack.c.b16 %v1971, %v1970
    %v1985 = vpack.c.b16 %v1973, %v1972
    %v1986 = vpack.c.b16 %v1975, %v1974
    %v1987 = vpack.c.b16 %v1977, %v1976
    %v1988 = vpack.c.b16 %v1979, %v1978
    %v1989 = vpack.c.b16 %v1981, %v1980
    %1998 = vmatprep.subr.bf16.mxu0 0
    %1999 = vmatpush1.bf16.msra.mxu0 %v1982
    %2000 = vmatprep.subr.bf16.mxu0 0
    %2001 = vmatpush1.bf16.msra.mxu0 %v1983
    %2002 = vmatprep.subr.bf16.mxu0 0
    %2003 = vmatpush1.bf16.msra.mxu0 %v1984
    %2004 = vmatprep.subr.bf16.mxu0 0
    %2005 = vmatpush1.bf16.msra.mxu0 %v1985
    %2006 = vmatprep.subr.bf16.mxu0 0
    %2007 = vmatpush1.bf16.msra.mxu0 %v1986
    %2008 = vmatprep.subr.bf16.mxu0 0
    %2009 = vmatpush1.bf16.msra.mxu0 %v1987
    %2010 = vmatprep.subr.bf16.mxu0 0
    %2011 = vmatpush1.bf16.msra.mxu0 %v1988
    %2012 = vmatprep.subr.bf16.mxu0 0
    %2013 = vmatpush1.bf16.msra.mxu0 %v1989
    %2014 = vmatprep.subr.bf16.mxu0 0
    %2015 = vmatpush1.bf16.msra.mxu0 0
    %2016 = vmatprep.subr.bf16.mxu0 0
    %2017 = vmatpush1.bf16.msra.mxu0 0
    %2018 = vmatprep.subr.bf16.mxu0 0
    %2019 = vmatpush1.bf16.msra.mxu0 0
    %2020 = vmatprep.subr.bf16.mxu0 0
    %2021 = vmatpush1.bf16.msra.mxu0 0
    %2022 = vmatprep.subr.bf16.mxu0 0
    %2023 = vmatpush1.bf16.msra.mxu0 0
    %2024 = vmatprep.subr.bf16.mxu0 0
    %2025 = vmatpush1.bf16.msra.mxu0 0
    %2026 = vmatprep.subr.bf16.mxu0 0
    %2027 = vmatpush1.bf16.msra.mxu0 0
    %2028 = vmatprep.subr.bf16.mxu0 0
    %2029 = vmatpush1.bf16.msra.mxu0 0
    %2030 = vmatprep.mubr.bf16.mxu0 0
    %2031 = vmatmul.mubr.bf16.gmra.mrb[0].mxu0 %v1844
    %v2032 = vpop.f32.mrb[0].mxu0
    %v2033 = vadd.f32 0.0, %v2032
    %v2034 = vpop.f32.mrb[0].mxu0
    %v2035 = vpop.f32.mrb[0].mxu0
    %v2036 = vpop.f32.mrb[0].mxu0
    %2037 = vdwg.mxu0
    %v2038 = vmax.f32 %v1928, %v2033
    %v2039 = vld [vmem:[%s15] sm:$0x3]
    %v2040 = vpack.c.bf16 %v2038, %v2038
    %v2042 = vsel %vm1497, %v2039, 0
    %v2045 = vsel %vm1501, %v2040, 0
    %2047 = vmatprep.subr.bf16.mxu0 0
    %2048 = vmatpush1.bf16.msra.mxu0 %v2045
    %2049 = vmatprep.subr.bf16.mxu0 0
    %2050 = vmatpush1.bf16.msra.mxu0 0
    %2051 = vmatprep.subr.bf16.mxu0 0
    %2052 = vmatpush1.bf16.msra.mxu0 0
    %2053 = vmatprep.subr.bf16.mxu0 0
    %2054 = vmatpush1.bf16.msra.mxu0 0
    %2055 = vmatprep.subr.bf16.mxu0 0
    %2056 = vmatpush1.bf16.msra.mxu0 0
    %2057 = vmatprep.subr.bf16.mxu0 0
    %2058 = vmatpush1.bf16.msra.mxu0 0
    %2059 = vmatprep.subr.bf16.mxu0 0
    %2060 = vmatpush1.bf16.msra.mxu0 0
    %2061 = vmatprep.subr.bf16.mxu0 0
    %2062 = vmatpush1.bf16.msra.mxu0 0
    %2063 = vmatprep.subr.bf16.mxu0 0
    %2064 = vmatpush1.bf16.msra.mxu0 0
    %2065 = vmatprep.subr.bf16.mxu0 0
    %2066 = vmatpush1.bf16.msra.mxu0 0
    %2067 = vmatprep.subr.bf16.mxu0 0
    %2068 = vmatpush1.bf16.msra.mxu0 0
    %2069 = vmatprep.subr.bf16.mxu0 0
    %2070 = vmatpush1.bf16.msra.mxu0 0
    %2071 = vmatprep.subr.bf16.mxu0 0
    %2072 = vmatpush1.bf16.msra.mxu0 0
    %2073 = vmatprep.subr.bf16.mxu0 0
    %2074 = vmatpush1.bf16.msra.mxu0 0
    %2075 = vmatprep.subr.bf16.mxu0 0
    %2076 = vmatpush1.bf16.msra.mxu0 0
    %2077 = vmatprep.subr.bf16.mxu0 0
    %2078 = vmatpush1.bf16.msra.mxu0 0
    %2079 = vmatprep.mubr.bf16.mxu0 0
    %2080 = vmatmul.mubr.bf16.gmra.mrb[0].mxu0 %v2042
    %v2081 = vpop.f32.mrb[0].mxu0
    %v2082 = vadd.f32 0.0, %v2081
    %v2083 = vpop.f32.mrb[0].mxu0
    %v2084 = vpop.f32.mrb[0].mxu0
    %v2085 = vpop.f32.mrb[0].mxu0
    %2086 = vdwg.mxu0
    %s2087 = scalar_lea.vmem %s15, 2
    %v2088 = vld [vmem:[%s2087] sm:$0x3]
    %v2090 = vsel %vm1497, %v2088, 0
    %2092 = vmatprep.subr.bf16.mxu0 0
    %2093 = vmatpush1.bf16.msra.mxu0 %v2045
    %2094 = vmatprep.subr.bf16.mxu0 0
    %2095 = vmatpush1.bf16.msra.mxu0 0
    %2096 = vmatprep.subr.bf16.mxu0 0
    %2097 = vmatpush1.bf16.msra.mxu0 0
    %2098 = vmatprep.subr.bf16.mxu0 0
    %2099 = vmatpush1.bf16.msra.mxu0 0
    %2100 = vmatprep.subr.bf16.mxu0 0
    %2101 = vmatpush1.bf16.msra.mxu0 0
    %2102 = vmatprep.subr.bf16.mxu0 0
    %2103 = vmatpush1.bf16.msra.mxu0 0
    %2104 = vmatprep.subr.bf16.mxu0 0
    %2105 = vmatpush1.bf16.msra.mxu0 0
    %2106 = vmatprep.subr.bf16.mxu0 0
    %2107 = vmatpush1.bf16.msra.mxu0 0
    %2108 = vmatprep.subr.bf16.mxu0 0
    %2109 = vmatpush1.bf16.msra.mxu0 0
    %2110 = vmatprep.subr.bf16.mxu0 0
    %2111 = vmatpush1.bf16.msra.mxu0 0
    %2112 = vmatprep.subr.bf16.mxu0 0
    %2113 = vmatpush1.bf16.msra.mxu0 0
    %2114 = vmatprep.subr.bf16.mxu0 0
    %2115 = vmatpush1.bf16.msra.mxu0 0
    %2116 = vmatprep.subr.bf16.mxu0 0
    %2117 = vmatpush1.bf16.msra.mxu0 0
    %2118 = vmatprep.subr.bf16.mxu0 0
    %2119 = vmatpush1.bf16.msra.mxu0 0
    %2120 = vmatprep.subr.bf16.mxu0 0
    %2121 = vmatpush1.bf16.msra.mxu0 0
    %2122 = vmatprep.subr.bf16.mxu0 0
    %2123 = vmatpush1.bf16.msra.mxu0 0
    %2124 = vmatprep.mubr.bf16.mxu0 0
    %2125 = vmatmul.mubr.bf16.gmra.mrb[0].mxu0 %v2090
    %v2126 = vpop.f32.mrb[0].mxu0
    %v2127 = vadd.f32 0.0, %v2126
    %v2128 = vpop.f32.mrb[0].mxu0
    %v2129 = vpop.f32.mrb[0].mxu0
    %v2130 = vpop.f32.mrb[0].mxu0
    %2131 = vdwg.mxu0
    %v2132 = vmax.f32 %v2082, %v2127
    %v2133 = vld [vmem:[%s17] sm:$0x1]
    %v2134 = vpack.c.bf16 %v2132, %v2132
    %vm2135 = vcmask 31744
    %v2137 = vsel %vm2135, %v2133, 0
    %vm2139 = vcmask 1041408
    %v2141 = vsel %vm2139, %v2134, 0
    %2143 = vmatprep.subr.bf16.mxu0 0
    %2144 = vmatpush1.bf16.msra.mxu0 %v2141
    %2145 = vmatprep.subr.bf16.mxu0 0
    %2146 = vmatpush1.bf16.msra.mxu0 0
    %2147 = vmatprep.subr.bf16.mxu0 0
    %2148 = vmatpush1.bf16.msra.mxu0 0
    %2149 = vmatprep.subr.bf16.mxu0 0
    %2150 = vmatpush1.bf16.msra.mxu0 0
    %2151 = vmatprep.subr.bf16.mxu0 0
    %2152 = vmatpush1.bf16.msra.mxu0 0
    %2153 = vmatprep.subr.bf16.mxu0 0
    %2154 = vmatpush1.bf16.msra.mxu0 0
    %2155 = vmatprep.subr.bf16.mxu0 0
    %2156 = vmatpush1.bf16.msra.mxu0 0
    %2157 = vmatprep.subr.bf16.mxu0 0
    %2158 = vmatpush1.bf16.msra.mxu0 0
    %2159 = vmatprep.subr.bf16.mxu0 0
    %2160 = vmatpush1.bf16.msra.mxu0 0
    %2161 = vmatprep.subr.bf16.mxu0 0
    %2162 = vmatpush1.bf16.msra.mxu0 0
    %2163 = vmatprep.subr.bf16.mxu0 0
    %2164 = vmatpush1.bf16.msra.mxu0 0
    %2165 = vmatprep.subr.bf16.mxu0 0
    %2166 = vmatpush1.bf16.msra.mxu0 0
    %2167 = vmatprep.subr.bf16.mxu0 0
    %2168 = vmatpush1.bf16.msra.mxu0 0
    %2169 = vmatprep.subr.bf16.mxu0 0
    %2170 = vmatpush1.bf16.msra.mxu0 0
    %2171 = vmatprep.subr.bf16.mxu0 0
    %2172 = vmatpush1.bf16.msra.mxu0 0
    %2173 = vmatprep.subr.bf16.mxu0 0
    %2174 = vmatpush1.bf16.msra.mxu0 0
    %2175 = vmatprep.mubr.bf16.mxu0 0
    %2176 = vmatmul.mubr.bf16.gmra.mrb[0].mxu0 %v2137
    %v2177 = vpop.f32.mrb[0].mxu0
    %v2178 = vadd.f32 0.0, %v2177
    %v2179 = vpop.f32.mrb[0].mxu0
    %v2180 = vpop.f32.mrb[0].mxu0
    %v2181 = vpop.f32.mrb[0].mxu0
    %2182 = vdwg.mxu0
    %s2183 = scalar_lea.vmem %s17, 1
    %v2184 = vld [vmem:[%s2183] sm:$0x1]
    %v2186 = vsel %vm2135, %v2184, 0
    %2188 = vmatprep.subr.bf16.mxu0 0
    %2189 = vmatpush1.bf16.msra.mxu0 %v2141
    %2190 = vmatprep.subr.bf16.mxu0 0
    %2191 = vmatpush1.bf16.msra.mxu0 0
    %2192 = vmatprep.subr.bf16.mxu0 0
    %2193 = vmatpush1.bf16.msra.mxu0 0
    %2194 = vmatprep.subr.bf16.mxu0 0
    %2195 = vmatpush1.bf16.msra.mxu0 0
    %2196 = vmatprep.subr.bf16.mxu0 0
    %2197 = vmatpush1.bf16.msra.mxu0 0
    %2198 = vmatprep.subr.bf16.mxu0 0
    %2199 = vmatpush1.bf16.msra.mxu0 0
    %2200 = vmatprep.subr.bf16.mxu0 0
    %2201 = vmatpush1.bf16.msra.mxu0 0
    %2202 = vmatprep.subr.bf16.mxu0 0
    %2203 = vmatpush1.bf16.msra.mxu0 0
    %2204 = vmatprep.subr.bf16.mxu0 0
    %2205 = vmatpush1.bf16.msra.mxu0 0
    %2206 = vmatprep.subr.bf16.mxu0 0
    %2207 = vmatpush1.bf16.msra.mxu0 0
    %2208 = vmatprep.subr.bf16.mxu0 0
    %2209 = vmatpush1.bf16.msra.mxu0 0
    %2210 = vmatprep.subr.bf16.mxu0 0
    %2211 = vmatpush1.bf16.msra.mxu0 0
    %2212 = vmatprep.subr.bf16.mxu0 0
    %2213 = vmatpush1.bf16.msra.mxu0 0
    %2214 = vmatprep.subr.bf16.mxu0 0
    %2215 = vmatpush1.bf16.msra.mxu0 0
    %2216 = vmatprep.subr.bf16.mxu0 0
    %2217 = vmatpush1.bf16.msra.mxu0 0
    %2218 = vmatprep.subr.bf16.mxu0 0
    %2219 = vmatpush1.bf16.msra.mxu0 0
    %2220 = vmatprep.mubr.bf16.mxu0 0
    %2221 = vmatmul.mubr.bf16.gmra.mrb[0].mxu0 %v2186
    %v2222 = vpop.f32.mrb[0].mxu0
    %v2223 = vadd.f32 0.0, %v2222
    %v2224 = vpop.f32.mrb[0].mxu0
    %v2225 = vpop.f32.mrb[0].mxu0
    %v2226 = vpop.f32.mrb[0].mxu0
    %2227 = vdwg.mxu0
    %v2228 = vld [vmem:[%s18] sm:$0xf]
    %v2229 = vld [vmem:[%s18 + $0x4] sm:$0xf]
    %v2230 = vld [vmem:[%s18 + $0x8] sm:$0xf]
    %v2231 = vld [vmem:[%s18 + $0xc] sm:$0xf]
    %v2232 = vld [vmem:[%s18 + $0x10] sm:$0xf]
    %v2233 = vld [vmem:[%s18 + $0x14] sm:$0xf]
    %v2234 = vld [vmem:[%s18 + $0x18] sm:$0xf]
    %v2235 = vld [vmem:[%s18 + $0x1c] sm:$0xf]
    %v2236 = vpack.c.bf16 %v2178, %v2178
    %s2237 = scalar_lea.vmem %s18, 32
    %v2238 = vld [vmem:[%s2237] sm:$0xf]
    %v2239 = vld [vmem:[%s2237 + $0x4] sm:$0xf]
    %v2240 = vld [vmem:[%s2237 + $0x8] sm:$0xf]
    %v2241 = vld [vmem:[%s2237 + $0xc] sm:$0xf]
    %v2242 = vld [vmem:[%s2237 + $0x10] sm:$0xf]
    %v2243 = vld [vmem:[%s2237 + $0x14] sm:$0xf]
    %v2244 = vld [vmem:[%s2237 + $0x18] sm:$0xf]
    %v2245 = vld [vmem:[%s2237 + $0x1c] sm:$0xf]
    %v2246 = vpack.c.bf16 %v2223, %v2223
    %v2255 = vunpack.c.l.b16 %v2238
    %v2256 = vunpack.c.l.b16 %v2239
    %v2257 = vunpack.c.l.b16 %v2240
    %v2258 = vunpack.c.l.b16 %v2241
    %v2259 = vunpack.c.l.b16 %v2242
    %v2260 = vunpack.c.l.b16 %v2243
    %v2261 = vunpack.c.l.b16 %v2244
    %v2262 = vunpack.c.l.b16 %v2245
    %v2263 = vpack.c.b16 %v2256, %v2255
    %v2264 = vpack.c.b16 %v2258, %v2257
    %v2265 = vpack.c.b16 %v2260, %v2259
    %v2266 = vpack.c.b16 %v2262, %v2261
    %v2272 = vsel %vm986, %v2246, 0
    %2274 = vmatprep.subr.bf16.mxu0 0
    %2275 = vmatpush1.bf16.msra.mxu0 %v2263
    %2276 = vmatprep.subr.bf16.mxu0 0
    %2277 = vmatpush1.bf16.msra.mxu0 %v2264
    %2278 = vmatprep.subr.bf16.mxu0 0
    %2279 = vmatpush1.bf16.msra.mxu0 %v2265
    %2280 = vmatprep.subr.bf16.mxu0 0
    %2281 = vmatpush1.bf16.msra.mxu0 %v2266
    %2282 = vmatprep.subr.bf16.mxu0 0
    %2283 = vmatpush1.bf16.msra.mxu0 0
    %2284 = vmatprep.subr.bf16.mxu0 0
    %2285 = vmatpush1.bf16.msra.mxu0 0
    %2286 = vmatprep.subr.bf16.mxu0 0
    %2287 = vmatpush1.bf16.msra.mxu0 0
    %2288 = vmatprep.subr.bf16.mxu0 0
    %2289 = vmatpush1.bf16.msra.mxu0 0
    %2290 = vmatprep.subr.bf16.mxu0 0
    %2291 = vmatpush1.bf16.msra.mxu0 0
    %2292 = vmatprep.subr.bf16.mxu0 0
    %2293 = vmatpush1.bf16.msra.mxu0 0
    %2294 = vmatprep.subr.bf16.mxu0 0
    %2295 = vmatpush1.bf16.msra.mxu0 0
    %2296 = vmatprep.subr.bf16.mxu0 0
    %2297 = vmatpush1.bf16.msra.mxu0 0
    %2298 = vmatprep.subr.bf16.mxu0 0
    %2299 = vmatpush1.bf16.msra.mxu0 0
    %2300 = vmatprep.subr.bf16.mxu0 0
    %2301 = vmatpush1.bf16.msra.mxu0 0
    %2302 = vmatprep.subr.bf16.mxu0 0
    %2303 = vmatpush1.bf16.msra.mxu0 0
    %2304 = vmatprep.subr.bf16.mxu0 0
    %2305 = vmatpush1.bf16.msra.mxu0 0
    %2306 = vmatprep.mubr.bf16.mxu0 0
    %2307 = vmatmul.mubr.bf16.gmra.mrb[0].mxu0 %v2272
    %v2308 = vpop.f32.mrb[0].mxu0
    %v2309 = vadd.f32 0.0, %v2308
    %v2310 = vpop.f32.mrb[0].mxu0
    %v2311 = vpop.f32.mrb[0].mxu0
    %v2312 = vpop.f32.mrb[0].mxu0
    %2313 = vdwg.mxu0
    %v2322 = vunpack.c.l.b16 %v2228
    %v2323 = vunpack.c.l.b16 %v2229
    %v2324 = vunpack.c.l.b16 %v2230
    %v2325 = vunpack.c.l.b16 %v2231
    %v2326 = vunpack.c.l.b16 %v2232
    %v2327 = vunpack.c.l.b16 %v2233
    %v2328 = vunpack.c.l.b16 %v2234
    %v2329 = vunpack.c.l.b16 %v2235
    %v2330 = vpack.c.b16 %v2323, %v2322
    %v2331 = vpack.c.b16 %v2325, %v2324
    %v2332 = vpack.c.b16 %v2327, %v2326
    %v2333 = vpack.c.b16 %v2329, %v2328
    %v2339 = vsel %vm986, %v2236, 0
    %2341 = vmatprep.subr.bf16.mxu0 0
    %2342 = vmatpush1.bf16.msra.mxu0 %v2330
    %2343 = vmatprep.subr.bf16.mxu0 0
    %2344 = vmatpush1.bf16.msra.mxu0 %v2331
    %2345 = vmatprep.subr.bf16.mxu0 0
    %2346 = vmatpush1.bf16.msra.mxu0 %v2332
    %2347 = vmatprep.subr.bf16.mxu0 0
    %2348 = vmatpush1.bf16.msra.mxu0 %v2333
    %2349 = vmatprep.subr.bf16.mxu0 0
    %2350 = vmatpush1.bf16.msra.mxu0 0
    %2351 = vmatprep.subr.bf16.mxu0 0
    %2352 = vmatpush1.bf16.msra.mxu0 0
    %2353 = vmatprep.subr.bf16.mxu0 0
    %2354 = vmatpush1.bf16.msra.mxu0 0
    %2355 = vmatprep.subr.bf16.mxu0 0
    %2356 = vmatpush1.bf16.msra.mxu0 0
    %2357 = vmatprep.subr.bf16.mxu0 0
    %2358 = vmatpush1.bf16.msra.mxu0 0
    %2359 = vmatprep.subr.bf16.mxu0 0
    %2360 = vmatpush1.bf16.msra.mxu0 0
    %2361 = vmatprep.subr.bf16.mxu0 0
    %2362 = vmatpush1.bf16.msra.mxu0 0
    %2363 = vmatprep.subr.bf16.mxu0 0
    %2364 = vmatpush1.bf16.msra.mxu0 0
    %2365 = vmatprep.subr.bf16.mxu0 0
    %2366 = vmatpush1.bf16.msra.mxu0 0
    %2367 = vmatprep.subr.bf16.mxu0 0
    %2368 = vmatpush1.bf16.msra.mxu0 0
    %2369 = vmatprep.subr.bf16.mxu0 0
    %2370 = vmatpush1.bf16.msra.mxu0 0
    %2371 = vmatprep.subr.bf16.mxu0 0
    %2372 = vmatpush1.bf16.msra.mxu0 0
    %2373 = vmatprep.mubr.bf16.mxu0 0
    %2374 = vmatmul.mubr.bf16.gmra.mrb[0].mxu0 %v2339
    %v2375 = vpop.f32.mrb[0].mxu0
    %v2376 = vadd.f32 %v2309, %v2375
    %v2377 = vpop.f32.mrb[0].mxu0
    %v2378 = vpop.f32.mrb[0].mxu0
    %v2379 = vpop.f32.mrb[0].mxu0
    %2380 = vdwg.mxu0
    %v2381 = vld [vmem:[%s19] sm:$0x1]
    %v2383 = vlaneseq
    %v2384 = vshrl.u32 %v2383, 7
    %v2385 = vsub.s32 0, %v2384
    %v2386 = vrot.slane %v2381, %v2385
    %v2388 = vadd.f32 %v2376, %v2386
    %v2389 = vmax.f32 %v2388, 0.0
    %v2390 = vld [vmem:[%s20] sm:$0xf]
    %v2391 = vld [vmem:[%s20 + $0x4] sm:$0xf]
    %v2392 = vld [vmem:[%s20 + $0x8] sm:$0xf]
    %v2393 = vld [vmem:[%s20 + $0xc] sm:$0xf]
    %v2394 = vld [vmem:[%s20 + $0x10] sm:$0xf]
    %v2395 = vld [vmem:[%s20 + $0x14] sm:$0xf]
    %v2396 = vld [vmem:[%s20 + $0x18] sm:$0xf]
    %v2397 = vld [vmem:[%s20 + $0x1c] sm:$0xf]
    %v2398 = vpack.c.bf16 %v2389, %v2389
    %v2399 = vld [vmem:[%s21] sm:$0x1]
    %v2401 = vlaneseq
    %v2402 = vshrl.u32 %v2401, 7
    %v2403 = vsub.s32 0, %v2402
    %v2404 = vrot.slane %v2399, %v2403
    %v2414 = vunpack.c.l.b16 %v2390
    %v2415 = vunpack.c.l.b16 %v2391
    %v2416 = vunpack.c.l.b16 %v2392
    %v2417 = vunpack.c.l.b16 %v2393
    %v2418 = vunpack.c.l.b16 %v2394
    %v2419 = vunpack.c.l.b16 %v2395
    %v2420 = vunpack.c.l.b16 %v2396
    %v2421 = vunpack.c.l.b16 %v2397
    %v2422 = vpack.c.b16 %v2415, %v2414
    %v2423 = vpack.c.b16 %v2417, %v2416
    %v2424 = vpack.c.b16 %v2419, %v2418
    %v2425 = vpack.c.b16 %v2421, %v2420
    %v2431 = vsel %vm986, %v2398, 0
    %2433 = vmatprep.subr.bf16.mxu0 0
    %2434 = vmatpush1.bf16.msra.mxu0 %v2422
    %2435 = vmatprep.subr.bf16.mxu0 0
    %2436 = vmatpush1.bf16.msra.mxu0 %v2423
    %2437 = vmatprep.subr.bf16.mxu0 0
    %2438 = vmatpush1.bf16.msra.mxu0 %v2424
    %2439 = vmatprep.subr.bf16.mxu0 0
    %2440 = vmatpush1.bf16.msra.mxu0 %v2425
    %2441 = vmatprep.subr.bf16.mxu0 0
    %2442 = vmatpush1.bf16.msra.mxu0 0
    %2443 = vmatprep.subr.bf16.mxu0 0
    %2444 = vmatpush1.bf16.msra.mxu0 0
    %2445 = vmatprep.subr.bf16.mxu0 0
    %2446 = vmatpush1.bf16.msra.mxu0 0
    %2447 = vmatprep.subr.bf16.mxu0 0
    %2448 = vmatpush1.bf16.msra.mxu0 0
    %2449 = vmatprep.subr.bf16.mxu0 0
    %2450 = vmatpush1.bf16.msra.mxu0 0
    %2451 = vmatprep.subr.bf16.mxu0 0
    %2452 = vmatpush1.bf16.msra.mxu0 0
    %2453 = vmatprep.subr.bf16.mxu0 0
    %2454 = vmatpush1.bf16.msra.mxu0 0
    %2455 = vmatprep.subr.bf16.mxu0 0
    %2456 = vmatpush1.bf16.msra.mxu0 0
    %2457 = vmatprep.subr.bf16.mxu0 0
    %2458 = vmatpush1.bf16.msra.mxu0 0
    %2459 = vmatprep.subr.bf16.mxu0 0
    %2460 = vmatpush1.bf16.msra.mxu0 0
    %2461 = vmatprep.subr.bf16.mxu0 0
    %2462 = vmatpush1.bf16.msra.mxu0 0
    %2463 = vmatprep.subr.bf16.mxu0 0
    %2464 = vmatpush1.bf16.msra.mxu0 0
    %2465 = vmatprep.mubr.bf16.mxu0 0
    %2466 = vmatmul.mubr.bf16.gmra.mrb[0].mxu0 %v2431
    %v2467 = vpop.f32.mrb[0].mxu0
    %v2468 = vadd.f32 %v2404, %v2467
    %v2469 = vpop.f32.mrb[0].mxu0
    %v2470 = vpop.f32.mrb[0].mxu0
    %v2471 = vpop.f32.mrb[0].mxu0
    %2472 = vdwg.mxu0
    %v2473 = vmax.f32 %v2468, 0.0
    %v2474 = vld [vmem:[%s22] sm:$0xf]
    %v2475 = vld [vmem:[%s22 + $0x4] sm:$0xf]
    %v2476 = vld [vmem:[%s22 + $0x8] sm:$0xf]
    %v2477 = vld [vmem:[%s22 + $0xc] sm:$0xf]
    %v2478 = vld [vmem:[%s22 + $0x10] sm:$0xf]
    %v2479 = vld [vmem:[%s22 + $0x14] sm:$0xf]
    %v2480 = vld [vmem:[%s22 + $0x18] sm:$0xf]
    %v2481 = vld [vmem:[%s22 + $0x1c] sm:$0xf]
    %v2482 = vpack.c.bf16 %v2473, %v2473
    %v2483 = vld [vmem:[%s23] sm:$0x1]
    %v2485 = vlaneseq
    %v2486 = vshrl.u32 %v2485, 7
    %v2487 = vsub.s32 0, %v2486
    %v2488 = vrot.slane %v2483, %v2487
    %v2498 = vunpack.c.l.b16 %v2474
    %v2499 = vunpack.c.l.b16 %v2475
    %v2500 = vunpack.c.l.b16 %v2476
    %v2501 = vunpack.c.l.b16 %v2477
    %v2502 = vunpack.c.l.b16 %v2478
    %v2503 = vunpack.c.l.b16 %v2479
    %v2504 = vunpack.c.l.b16 %v2480
    %v2505 = vunpack.c.l.b16 %v2481
    %v2506 = vpack.c.b16 %v2499, %v2498
    %v2507 = vpack.c.b16 %v2501, %v2500
    %v2508 = vpack.c.b16 %v2503, %v2502
    %v2509 = vpack.c.b16 %v2505, %v2504
    %v2515 = vsel %vm986, %v2482, 0
    %2517 = vmatprep.subr.bf16.mxu0 0
    %2518 = vmatpush1.bf16.msra.mxu0 %v2506
    %2519 = vmatprep.subr.bf16.mxu0 0
    %2520 = vmatpush1.bf16.msra.mxu0 %v2507
    %2521 = vmatprep.subr.bf16.mxu0 0
    %2522 = vmatpush1.bf16.msra.mxu0 %v2508
    %2523 = vmatprep.subr.bf16.mxu0 0
    %2524 = vmatpush1.bf16.msra.mxu0 %v2509
    %2525 = vmatprep.subr.bf16.mxu0 0
    %2526 = vmatpush1.bf16.msra.mxu0 0
    %2527 = vmatprep.subr.bf16.mxu0 0
    %2528 = vmatpush1.bf16.msra.mxu0 0
    %2529 = vmatprep.subr.bf16.mxu0 0
    %2530 = vmatpush1.bf16.msra.mxu0 0
    %2531 = vmatprep.subr.bf16.mxu0 0
    %2532 = vmatpush1.bf16.msra.mxu0 0
    %2533 = vmatprep.subr.bf16.mxu0 0
    %2534 = vmatpush1.bf16.msra.mxu0 0
    %2535 = vmatprep.subr.bf16.mxu0 0
    %2536 = vmatpush1.bf16.msra.mxu0 0
    %2537 = vmatprep.subr.bf16.mxu0 0
    %2538 = vmatpush1.bf16.msra.mxu0 0
    %2539 = vmatprep.subr.bf16.mxu0 0
    %2540 = vmatpush1.bf16.msra.mxu0 0
    %2541 = vmatprep.subr.bf16.mxu0 0
    %2542 = vmatpush1.bf16.msra.mxu0 0
    %2543 = vmatprep.subr.bf16.mxu0 0
    %2544 = vmatpush1.bf16.msra.mxu0 0
    %2545 = vmatprep.subr.bf16.mxu0 0
    %2546 = vmatpush1.bf16.msra.mxu0 0
    %2547 = vmatprep.subr.bf16.mxu0 0
    %2548 = vmatpush1.bf16.msra.mxu0 0
    %2549 = vmatprep.mubr.bf16.mxu0 0
    %2550 = vmatmul.mubr.bf16.gmra.mrb[0].mxu0 %v2515
    %v2551 = vpop.f32.mrb[0].mxu0
    %v2552 = vadd.f32 %v2488, %v2551
    %v2553 = vpop.f32.mrb[0].mxu0
    %v2554 = vpop.f32.mrb[0].mxu0
    %v2555 = vpop.f32.mrb[0].mxu0
    %2556 = vdwg.mxu0
    %s2557 = sld [smem:[#allocation2]]
    %v2558 = vstv %s2557
    %v2559 = vmul.f32 %v2558, %v2552
    %v2560 = vtanh.pop %v2559
    %vm2561 = vcmask 123904
    %2562 = vst.msk [vmem:[#allocation3] sm:$0x3] %vm2561, %v2560
    // Predicated region
    $region98: #{vggfc_forward.1} parent=1 // pred_check
      _
    $region99: #{vggfc_forward.1} parent=1 // pred_check_branch
      %2564 = sbr.rel (0) target = $region101
    $region100: #{vggfc_forward.1} parent=1 // pred_region
      %s2566 = ssub.s32 32, 32
      %2567 = vsyncadd [#allocation4], %s2566
      %s2569 = sshll.u32 [#allocation3], 4
      %s2570 = int_to_ptr.vmem [resolvable:$true] %s2569
      %2572 = dma.vmem_to_hbm [thread:$0]  %s2570, 32, %s24, [#allocation4]
    $region101: #{vggfc_forward.1} parent=1 // pred_fallthru
      _
    // Predicated region
    $region102: #{vggfc_forward.1} parent=1 // pred_check
      _
    $region103: #{vggfc_forward.1} parent=1 // pred_check_branch
      %2574 = sbr.rel (0) target = $region105
    $region104: #{vggfc_forward.1} parent=1 // pred_region
      %2575 = dma.done [#allocation4], 32
    $region105: #{vggfc_forward.1} parent=1 // pred_fallthru
      _
    %2576 = vsyncpa [#allocation4], 1

</llo_original>
